<compile_context>
chip_gen: v7x
topology: tpu7x:2x2x1
jax: 0.10.0
libtpu: 0.0.40
codegen_flags: <defaults>
</compile_context>

<pallas_src>
import functools
import math

import jax
import jax.numpy as jnp
from jax import lax
from jax.experimental import pallas as pl
from jax.experimental.pallas import tpu as pltpu


# ---------------------------------------------------------------------------
# Fused MHA kernel: one grid step per block of `block_b` batch rows.
# ---------------------------------------------------------------------------
def _mha_fused_kernel(key_ref, value_ref, query_ref, wqkv_ref, bqkv_ref,
                      wf_ref, bf_ref, g_ref, beta_ref,
                      out_ref, attn_ref,
                      q_scr, k_scr, v_scr, ctx2d_scr, *,
                      num_heads, dim_per_head, seq_len, model_dim, block_b,
                      scale, eps):
    H, D, L, MD, BT = num_heads, dim_per_head, seq_len, model_dim, block_b
    T = H * L            # "flat" rows per batch after torch's .view
    G = BT * H           # (batch, head) pairs handled in this grid step
    f32, bf16 = jnp.float32, jnp.bfloat16

    xk = key_ref[...]    # (BT*L, MD) f32
    xv = value_ref[...]
    xq = query_ref[...]  # also the residual

    # ---- fused QKV projections: bf16 operands, f32 accumulation on the MXU ----
    k2d = jnp.dot(xk.astype(bf16), wqkv_ref[0], preferred_element_type=f32) + bqkv_ref[0]
    v2d = jnp.dot(xv.astype(bf16), wqkv_ref[1], preferred_element_type=f32) + bqkv_ref[1]
    q2d = jnp.dot(xq.astype(bf16), wqkv_ref[2], preferred_element_type=f32) + bqkv_ref[2]

    # ---- faithful torch .view(B*H, -1, D): per batch row it is the row-major
    #      reshape (L, H*D) -> (H*L, D), i.e. flat row  b*T + l*H + j  takes
    #      x2d[b*L + l, j*D:(j+1)*D].  Materialise it with sublane-strided
    #      scratch stores (no iota masks, no selection matmuls). ----
    for b in range(BT):
        for j in range(H):
            rows = pl.ds(b * T + j, L, stride=H)
            src = slice(b * L, (b + 1) * L)
            col = slice(j * D, (j + 1) * D)
            q_scr[rows, :] = q2d[src, col]
            k_scr[rows, :] = k2d[src, col]
            v_scr[rows, :] = v2d[src, col]

    # ---- attention for all (batch, head) pairs in one batched einsum.
    #      scale folded into q (L*D elems instead of the L*L score matrix). ----
    q3 = (q_scr[...] * scale).reshape(G, L, D).astype(bf16)
    k3 = k_scr[...].reshape(G, L, D).astype(bf16)
    v3 = v_scr[...].reshape(G, L, D).astype(bf16)

    s = jnp.einsum("gqd,gkd->gqk", q3, k3, preferred_element_type=f32)
    s = s - jnp.max(s, axis=-1, keepdims=True)
    e = jnp.exp(s)
    p = e * pl.reciprocal(jnp.sum(e, axis=-1, keepdims=True), approx=True)

    # single bf16 writeback of the attention probabilities for this step
    attn_ref[...] = p.reshape(G * L, L).astype(attn_ref.dtype)

    ctx = jnp.einsum("gqk,gkd->gqd", p.astype(bf16), v3,
                     preferred_element_type=f32)              # (G, L, D) f32

    # ---- reverse .view: flat (T, D) -> (L, H*D).  q_scr's contents are fully
    #      consumed, so reuse it to hold the flat context, then read it back
    #      with strided loads into a lane-contiguous (BT*L, MD) scratch so the
    #      final projection is ONE big matmul. ----
    q_scr[...] = ctx.reshape(BT * T, D)
    for b in range(BT):
        for j in range(H):
            ctx2d_scr[b * L:(b + 1) * L, j * D:(j + 1) * D] = (
                q_scr[pl.ds(b * T + j, L, stride=H), :])

    # ---- final projection + bias + residual + LayerNorm ----
    y = jnp.dot(ctx2d_scr[...].astype(bf16), wf_ref[...],
                preferred_element_type=f32) + bf_ref[...] + xq
    mean = jnp.mean(y, axis=-1, keepdims=True)
    var = jnp.mean(jnp.square(y - mean), axis=-1, keepdims=True)
    yn = (y - mean) * lax.rsqrt(var + eps)
    out_ref[...] = (yn * g_ref[...] + beta_ref[...]).astype(out_ref.dtype)


# ---------------------------------------------------------------------------
# Wrapper: one pallas_call for the whole forward pass.
# ---------------------------------------------------------------------------
def multi_head_attention(params, key, value, query, *, model_dim, num_heads,
                         block_b=None):
    dim_per_head = model_dim // num_heads
    assert dim_per_head * num_heads == model_dim
    B, L, _ = key.shape
    T = num_heads * L

    if block_b is None:
        # Stack batch rows per grid step so the projection matmuls see
        # M = block_b*L rows (targets >=128 to fill the MXU when B allows it).
        block_b = max(1, min(B, max(1, 128 // max(L, 1))))
        while B % block_b:
            block_b -= 1
    grid = (B // block_b,)

    # Faithful to the PyTorch module: integer floor division inside the scale.
    scale = float((dim_per_head // num_heads) ** (-0.5))

    # Weights shipped as bf16 (half the DMA / resident VMEM); biases stay f32.
    wqkv = jnp.stack([params["wk"], params["wv"], params["wq"]]).astype(jnp.bfloat16)
    bqkv = jnp.stack([params["bk"], params["bv"], params["bq"]])[:, None, :]   # (3,1,MD) f32
    wf = params["wf"].astype(jnp.bfloat16)

    kernel = functools.partial(
        _mha_fused_kernel, num_heads=num_heads, dim_per_head=dim_per_head,
        seq_len=L, model_dim=model_dim, block_b=block_b, scale=scale, eps=1e-5)

    out2d, attn2d = pl.pallas_call(
        kernel,
        out_shape=(
            jax.ShapeDtypeStruct((B * L, model_dim), jnp.float32),
            jax.ShapeDtypeStruct((B * num_heads * L, L), jnp.bfloat16),
        ),
        grid=grid,
        in_specs=[
            pl.BlockSpec((block_b * L, model_dim), lambda i: (i, 0)),        # key
            pl.BlockSpec((block_b * L, model_dim), lambda i: (i, 0)),        # value
            pl.BlockSpec((block_b * L, model_dim), lambda i: (i, 0)),        # query
            pl.BlockSpec((3, model_dim, model_dim), lambda i: (0, 0, 0)),    # Wk/Wv/Wq (bf16)
            pl.BlockSpec((3, 1, model_dim), lambda i: (0, 0, 0)),            # bk/bv/bq
            pl.BlockSpec((model_dim, model_dim), lambda i: (0, 0)),          # Wf (bf16)
            pl.BlockSpec((1, model_dim), lambda i: (0, 0)),                  # bf
            pl.BlockSpec((1, model_dim), lambda i: (0, 0)),                  # ln gamma
            pl.BlockSpec((1, model_dim), lambda i: (0, 0)),                  # ln beta
        ],
        out_specs=(
            pl.BlockSpec((block_b * L, model_dim), lambda i: (i, 0)),
            pl.BlockSpec((block_b * num_heads * L, L), lambda i: (i, 0)),
        ),
        scratch_shapes=[
            pltpu.VMEM((block_b * T, dim_per_head), jnp.float32),   # q (reused for ctx)
            pltpu.VMEM((block_b * T, dim_per_head), jnp.float32),   # k
            pltpu.VMEM((block_b * T, dim_per_head), jnp.float32),   # v
            pltpu.VMEM((block_b * L, model_dim), jnp.float32),      # de-scrambled ctx
        ],
        compiler_params=pltpu.CompilerParams(
            dimension_semantics=("parallel",),
            vmem_limit_bytes=32 * 1024 * 1024),
    )(key.reshape(B * L, model_dim), value.reshape(B * L, model_dim),
      query.reshape(B * L, model_dim),
      wqkv, bqkv, wf, params["bf"][None, :],
      params["ln_g"][None, :], params["ln_b"][None, :])

    out = out2d.reshape(B, L, model_dim)
    # bf16 HBM writeback; cast back to f32 for API parity with the torch module.
    attn = attn2d.astype(jnp.float32).reshape(B * num_heads, L, L)
    return out, attn


def init_params(rng, model_dim):
    # deterministic synthetic weights (shapes follow nn.Linear(model_dim, model_dim),
    # stored as (Din, Dout) == torch W^T)
    keys = jax.random.split(rng, 8)
    bound = 1.0 / math.sqrt(model_dim)
    u = lambda k, shape: jax.random.uniform(k, shape, jnp.float32, -bound, bound)
    return {
        "wk": u(keys[0], (model_dim, model_dim)), "bk": u(keys[1], (model_dim,)),
        "wv": u(keys[2], (model_dim, model_dim)), "bv": u(keys[3], (model_dim,)),
        "wq": u(keys[4], (model_dim, model_dim)), "bq": u(keys[5], (model_dim,)),
        "wf": u(keys[6], (model_dim, model_dim)), "bf": u(keys[7], (model_dim,)),
        "ln_g": jnp.ones((model_dim,), jnp.float32),
        "ln_b": jnp.zeros((model_dim,), jnp.float32),
    }


# ---------------------------------------------------------------------------
# Pure-JAX f32 reference (faithful to the PyTorch module) for correctness check
# ---------------------------------------------------------------------------
def reference(params, key, value, query, *, model_dim, num_heads):
    dim_per_head = model_dim // num_heads
    B = key.shape[0]
    residual = query
    k = key @ params["wk"] + params["bk"]
    v = value @ params["wv"] + params["bv"]
    q = query @ params["wq"] + params["bq"]
    k = k.reshape(B * num_heads, -1, dim_per_head)
    v = v.reshape(B * num_heads, -1, dim_per_head)
    q = q.reshape(B * num_heads, -1, dim_per_head)
    scale = float((dim_per_head // num_heads) ** (-0.5))
    s = jnp.einsum("bqd,bkd->bqk", q, k) * scale
    p = jax.nn.softmax(s, axis=2)
    ctx = jnp.einsum("bqk,bkd->bqd", p, v)
    ctx = ctx.reshape(B, -1, dim_per_head * num_heads)
    out = ctx @ params["wf"] + params["bf"]
    y = residual + out
    mean = jnp.mean(y, axis=-1, keepdims=True)
    var = jnp.mean(jnp.square(y - mean), axis=-1, keepdims=True)
    yn = (y - mean) / jnp.sqrt(var + 1e-5)
    return yn * params["ln_g"] + params["ln_b"], p


if __name__ == "__main__":
    model_dim = 48     # divisible by num_heads (required for linear_final to be well-formed)
    num_heads = 3
    B, L = 2, 8

    rng = jax.random.PRNGKey(0)
    rk, rv, rq, rp = jax.random.split(rng, 4)
    key_in = jax.random.normal(rk, (B, L, model_dim), jnp.float32)
    value_in = jax.random.normal(rv, (B, L, model_dim), jnp.float32)
    query_in = jax.random.normal(rq, (B, L, model_dim), jnp.float32)
    params = init_params(rp, model_dim)

    out, attn = multi_head_attention(
        params, key_in, value_in, query_in, model_dim=model_dim, num_heads=num_heads
    )
    out, attn = jax.block_until_ready((out, attn))

    out_ref, attn_ref = reference(
        params, key_in, value_in, query_in, model_dim=model_dim, num_heads=num_heads
    )
    assert out.shape == (B, L, model_dim)
    assert attn.shape == (B * num_heads, L, L)
    # Tolerances account for bf16 matmul operands / bf16 attn writeback and the
    # EUP approximate reciprocal (f32 reference).
    assert jnp.allclose(out, out_ref, atol=3e-2, rtol=3e-2)
    assert jnp.allclose(attn, attn_ref, atol=2e-2, rtol=2e-2)

    print("KERNEL_OK")
</pallas_src>

<mosaic_0001>
module attributes {stable_mosaic.version = 11 : i64} {
  func.func @_mha_fused_kernel(%arg0: i32, %arg1: memref<16x48xf32, #tpu.memory_space<vmem>>, %arg2: memref<16x48xf32, #tpu.memory_space<vmem>>, %arg3: memref<16x48xf32, #tpu.memory_space<vmem>>, %arg4: memref<3x48x48xbf16, #tpu.memory_space<vmem>>, %arg5: memref<3x1x48xf32, #tpu.memory_space<vmem>>, %arg6: memref<48x48xbf16, #tpu.memory_space<vmem>>, %arg7: memref<1x48xf32, #tpu.memory_space<vmem>>, %arg8: memref<1x48xf32, #tpu.memory_space<vmem>>, %arg9: memref<1x48xf32, #tpu.memory_space<vmem>>, %arg10: memref<16x48xf32, #tpu.memory_space<vmem>>, %arg11: memref<48x8xbf16, #tpu.memory_space<vmem>>, %arg12: memref<48x16xf32, #tpu.memory_space<vmem>>, %arg13: memref<48x16xf32, #tpu.memory_space<vmem>>, %arg14: memref<48x16xf32, #tpu.memory_space<vmem>>, %arg15: memref<16x48xf32, #tpu.memory_space<vmem>>) attributes {dimension_semantics = [#tpu.dimension_semantics<parallel>], iteration_bounds = array<i64: 1>, scalar_prefetch = 0 : i64, scratch_operands = 4 : i64, tpu.core_type = #tpu.core_type<tc>, window_params = [{transform_indices = @transform_0, window_bounds = array<i64: 16, 48>}, {transform_indices = @transform_1, window_bounds = array<i64: 16, 48>}, {transform_indices = @transform_2, window_bounds = array<i64: 16, 48>}, {pipeline_mode = #tpu.pipeline_mode<synchronous>, transform_indices = @transform_3, window_bounds = array<i64: 3, 48, 48>}, {pipeline_mode = #tpu.pipeline_mode<synchronous>, transform_indices = @transform_4, window_bounds = array<i64: 3, 1, 48>}, {pipeline_mode = #tpu.pipeline_mode<synchronous>, transform_indices = @transform_5, window_bounds = array<i64: 48, 48>}, {pipeline_mode = #tpu.pipeline_mode<synchronous>, transform_indices = @transform_6, window_bounds = array<i64: 1, 48>}, {pipeline_mode = #tpu.pipeline_mode<synchronous>, transform_indices = @transform_7, window_bounds = array<i64: 1, 48>}, {pipeline_mode = #tpu.pipeline_mode<synchronous>, transform_indices = @transform_8, window_bounds = array<i64: 1, 48>}, {transform_indices = @transform_9, window_bounds = array<i64: 16, 48>}, {transform_indices = @transform_10, window_bounds = array<i64: 48, 8>}]} {
    %c0 = arith.constant 0 : index
    %c0_0 = arith.constant 0 : index
    %0 = vector.load %arg1[%c0, %c0_0] : memref<16x48xf32, #tpu.memory_space<vmem>>, vector<16x48xf32>
    %c0_1 = arith.constant 0 : index
    %c0_2 = arith.constant 0 : index
    %1 = vector.load %arg2[%c0_1, %c0_2] : memref<16x48xf32, #tpu.memory_space<vmem>>, vector<16x48xf32>
    %c0_3 = arith.constant 0 : index
    %c0_4 = arith.constant 0 : index
    %2 = vector.load %arg3[%c0_3, %c0_4] : memref<16x48xf32, #tpu.memory_space<vmem>>, vector<16x48xf32>
    %3 = arith.truncf %0 : vector<16x48xf32> to vector<16x48xbf16>
    %c0_5 = arith.constant 0 : index
    %c0_6 = arith.constant 0 : index
    %c0_7 = arith.constant 0 : index
    %4 = vector.load %arg4[%c0_5, %c0_6, %c0_7] : memref<3x48x48xbf16, #tpu.memory_space<vmem>>, vector<1x48x48xbf16>
    %5 = vector.shape_cast %4 : vector<1x48x48xbf16> to vector<48x48xbf16>
    %cst = arith.constant dense<0.000000e+00> : vector<16x48xf32>
    %6 = tpu.matmul %3, %5, %cst {dimension_numbers = #tpu.dot_dimension_numbers<[1], [0], [0], [1], [0, 0, 1, 1], [], []>} : vector<16x48xbf16>, vector<48x48xbf16>, vector<16x48xf32> -> vector<16x48xf32>
    %c0_8 = arith.constant 0 : index
    %c0_9 = arith.constant 0 : index
    %c0_10 = arith.constant 0 : index
    %7 = vector.load %arg5[%c0_8, %c0_9, %c0_10] : memref<3x1x48xf32, #tpu.memory_space<vmem>>, vector<1x1x48xf32>
    %8 = vector.shape_cast %7 : vector<1x1x48xf32> to vector<1x48xf32>
    %9 = vector.broadcast %8 : vector<1x48xf32> to vector<16x48xf32>
    %10 = arith.addf %6, %9 : vector<16x48xf32>
    %11 = arith.truncf %1 : vector<16x48xf32> to vector<16x48xbf16>
    %c1 = arith.constant 1 : index
    %c0_11 = arith.constant 0 : index
    %c0_12 = arith.constant 0 : index
    %12 = vector.load %arg4[%c1, %c0_11, %c0_12] : memref<3x48x48xbf16, #tpu.memory_space<vmem>>, vector<1x48x48xbf16>
    %13 = vector.shape_cast %12 : vector<1x48x48xbf16> to vector<48x48xbf16>
    %cst_13 = arith.constant dense<0.000000e+00> : vector<16x48xf32>
    %14 = tpu.matmul %11, %13, %cst_13 {dimension_numbers = #tpu.dot_dimension_numbers<[1], [0], [0], [1], [0, 0, 1, 1], [], []>} : vector<16x48xbf16>, vector<48x48xbf16>, vector<16x48xf32> -> vector<16x48xf32>
    %c1_14 = arith.constant 1 : index
    %c0_15 = arith.constant 0 : index
    %c0_16 = arith.constant 0 : index
    %15 = vector.load %arg5[%c1_14, %c0_15, %c0_16] : memref<3x1x48xf32, #tpu.memory_space<vmem>>, vector<1x1x48xf32>
    %16 = vector.shape_cast %15 : vector<1x1x48xf32> to vector<1x48xf32>
    %17 = vector.broadcast %16 : vector<1x48xf32> to vector<16x48xf32>
    %18 = arith.addf %14, %17 : vector<16x48xf32>
    %19 = arith.truncf %2 : vector<16x48xf32> to vector<16x48xbf16>
    %c2 = arith.constant 2 : index
    %c0_17 = arith.constant 0 : index
    %c0_18 = arith.constant 0 : index
    %20 = vector.load %arg4[%c2, %c0_17, %c0_18] : memref<3x48x48xbf16, #tpu.memory_space<vmem>>, vector<1x48x48xbf16>
    %21 = vector.shape_cast %20 : vector<1x48x48xbf16> to vector<48x48xbf16>
    %cst_19 = arith.constant dense<0.000000e+00> : vector<16x48xf32>
    %22 = tpu.matmul %19, %21, %cst_19 {dimension_numbers = #tpu.dot_dimension_numbers<[1], [0], [0], [1], [0, 0, 1, 1], [], []>} : vector<16x48xbf16>, vector<48x48xbf16>, vector<16x48xf32> -> vector<16x48xf32>
    %c2_20 = arith.constant 2 : index
    %c0_21 = arith.constant 0 : index
    %c0_22 = arith.constant 0 : index
    %23 = vector.load %arg5[%c2_20, %c0_21, %c0_22] : memref<3x1x48xf32, #tpu.memory_space<vmem>>, vector<1x1x48xf32>
    %24 = vector.shape_cast %23 : vector<1x1x48xf32> to vector<1x48xf32>
    %25 = vector.broadcast %24 : vector<1x48xf32> to vector<16x48xf32>
    %26 = arith.addf %22, %25 : vector<16x48xf32>
    %27 = vector.extract_strided_slice %26 {offsets = [0, 0], sizes = [8, 16], strides = [1, 1]} : vector<16x48xf32> to vector<8x16xf32>
    %c0_23 = arith.constant 0 : index
    %c0_24 = arith.constant 0 : index
    %28 = tpu.strided_load %arg12[%c0_23, %c0_24] {strides = array<i32: 3, 1>} : memref<48x16xf32, #tpu.memory_space<vmem>>, vector<8x16xf32>
    tpu.strided_store %arg12[%c0_23, %c0_24], %27 {strides = array<i32: 3, 1>} : memref<48x16xf32, #tpu.memory_space<vmem>>, vector<8x16xf32>
    %29 = vector.extract_strided_slice %10 {offsets = [0, 0], sizes = [8, 16], strides = [1, 1]} : vector<16x48xf32> to vector<8x16xf32>
    %c0_25 = arith.constant 0 : index
    %c0_26 = arith.constant 0 : index
    %30 = tpu.strided_load %arg13[%c0_25, %c0_26] {strides = array<i32: 3, 1>} : memref<48x16xf32, #tpu.memory_space<vmem>>, vector<8x16xf32>
    tpu.strided_store %arg13[%c0_25, %c0_26], %29 {strides = array<i32: 3, 1>} : memref<48x16xf32, #tpu.memory_space<vmem>>, vector<8x16xf32>
    %31 = vector.extract_strided_slice %18 {offsets = [0, 0], sizes = [8, 16], strides = [1, 1]} : vector<16x48xf32> to vector<8x16xf32>
    %c0_27 = arith.constant 0 : index
    %c0_28 = arith.constant 0 : index
    %32 = tpu.strided_load %arg14[%c0_27, %c0_28] {strides = array<i32: 3, 1>} : memref<48x16xf32, #tpu.memory_space<vmem>>, vector<8x16xf32>
    tpu.strided_store %arg14[%c0_27, %c0_28], %31 {strides = array<i32: 3, 1>} : memref<48x16xf32, #tpu.memory_space<vmem>>, vector<8x16xf32>
    %33 = vector.extract_strided_slice %26 {offsets = [0, 16], sizes = [8, 16], strides = [1, 1]} : vector<16x48xf32> to vector<8x16xf32>
    %c1_29 = arith.constant 1 : index
    %c0_30 = arith.constant 0 : index
    %34 = tpu.strided_load %arg12[%c1_29, %c0_30] {strides = array<i32: 3, 1>} : memref<48x16xf32, #tpu.memory_space<vmem>>, vector<8x16xf32>
    tpu.strided_store %arg12[%c1_29, %c0_30], %33 {strides = array<i32: 3, 1>} : memref<48x16xf32, #tpu.memory_space<vmem>>, vector<8x16xf32>
    %35 = vector.extract_strided_slice %10 {offsets = [0, 16], sizes = [8, 16], strides = [1, 1]} : vector<16x48xf32> to vector<8x16xf32>
    %c1_31 = arith.constant 1 : index
    %c0_32 = arith.constant 0 : index
    %36 = tpu.strided_load %arg13[%c1_31, %c0_32] {strides = array<i32: 3, 1>} : memref<48x16xf32, #tpu.memory_space<vmem>>, vector<8x16xf32>
    tpu.strided_store %arg13[%c1_31, %c0_32], %35 {strides = array<i32: 3, 1>} : memref<48x16xf32, #tpu.memory_space<vmem>>, vector<8x16xf32>
    %37 = vector.extract_strided_slice %18 {offsets = [0, 16], sizes = [8, 16], strides = [1, 1]} : vector<16x48xf32> to vector<8x16xf32>
    %c1_33 = arith.constant 1 : index
    %c0_34 = arith.constant 0 : index
    %38 = tpu.strided_load %arg14[%c1_33, %c0_34] {strides = array<i32: 3, 1>} : memref<48x16xf32, #tpu.memory_space<vmem>>, vector<8x16xf32>
    tpu.strided_store %arg14[%c1_33, %c0_34], %37 {strides = array<i32: 3, 1>} : memref<48x16xf32, #tpu.memory_space<vmem>>, vector<8x16xf32>
    %39 = vector.extract_strided_slice %26 {offsets = [0, 32], sizes = [8, 16], strides = [1, 1]} : vector<16x48xf32> to vector<8x16xf32>
    %c2_35 = arith.constant 2 : index
    %c0_36 = arith.constant 0 : index
    %40 = tpu.strided_load %arg12[%c2_35, %c0_36] {strides = array<i32: 3, 1>} : memref<48x16xf32, #tpu.memory_space<vmem>>, vector<8x16xf32>
    tpu.strided_store %arg12[%c2_35, %c0_36], %39 {strides = array<i32: 3, 1>} : memref<48x16xf32, #tpu.memory_space<vmem>>, vector<8x16xf32>
    %41 = vector.extract_strided_slice %10 {offsets = [0, 32], sizes = [8, 16], strides = [1, 1]} : vector<16x48xf32> to vector<8x16xf32>
    %c2_37 = arith.constant 2 : index
    %c0_38 = arith.constant 0 : index
    %42 = tpu.strided_load %arg13[%c2_37, %c0_38] {strides = array<i32: 3, 1>} : memref<48x16xf32, #tpu.memory_space<vmem>>, vector<8x16xf32>
    tpu.strided_store %arg13[%c2_37, %c0_38], %41 {strides = array<i32: 3, 1>} : memref<48x16xf32, #tpu.memory_space<vmem>>, vector<8x16xf32>
    %43 = vector.extract_strided_slice %18 {offsets = [0, 32], sizes = [8, 16], strides = [1, 1]} : vector<16x48xf32> to vector<8x16xf32>
    %c2_39 = arith.constant 2 : index
    %c0_40 = arith.constant 0 : index
    %44 = tpu.strided_load %arg14[%c2_39, %c0_40] {strides = array<i32: 3, 1>} : memref<48x16xf32, #tpu.memory_space<vmem>>, vector<8x16xf32>
    tpu.strided_store %arg14[%c2_39, %c0_40], %43 {strides = array<i32: 3, 1>} : memref<48x16xf32, #tpu.memory_space<vmem>>, vector<8x16xf32>
    %45 = vector.extract_strided_slice %26 {offsets = [8, 0], sizes = [8, 16], strides = [1, 1]} : vector<16x48xf32> to vector<8x16xf32>
    %c24 = arith.constant 24 : index
    %c0_41 = arith.constant 0 : index
    %46 = tpu.strided_load %arg12[%c24, %c0_41] {strides = array<i32: 3, 1>} : memref<48x16xf32, #tpu.memory_space<vmem>>, vector<8x16xf32>
    tpu.strided_store %arg12[%c24, %c0_41], %45 {strides = array<i32: 3, 1>} : memref<48x16xf32, #tpu.memory_space<vmem>>, vector<8x16xf32>
    %47 = vector.extract_strided_slice %10 {offsets = [8, 0], sizes = [8, 16], strides = [1, 1]} : vector<16x48xf32> to vector<8x16xf32>
    %c24_42 = arith.constant 24 : index
    %c0_43 = arith.constant 0 : index
    %48 = tpu.strided_load %arg13[%c24_42, %c0_43] {strides = array<i32: 3, 1>} : memref<48x16xf32, #tpu.memory_space<vmem>>, vector<8x16xf32>
    tpu.strided_store %arg13[%c24_42, %c0_43], %47 {strides = array<i32: 3, 1>} : memref<48x16xf32, #tpu.memory_space<vmem>>, vector<8x16xf32>
    %49 = vector.extract_strided_slice %18 {offsets = [8, 0], sizes = [8, 16], strides = [1, 1]} : vector<16x48xf32> to vector<8x16xf32>
    %c24_44 = arith.constant 24 : index
    %c0_45 = arith.constant 0 : index
    %50 = tpu.strided_load %arg14[%c24_44, %c0_45] {strides = array<i32: 3, 1>} : memref<48x16xf32, #tpu.memory_space<vmem>>, vector<8x16xf32>
    tpu.strided_store %arg14[%c24_44, %c0_45], %49 {strides = array<i32: 3, 1>} : memref<48x16xf32, #tpu.memory_space<vmem>>, vector<8x16xf32>
    %51 = vector.extract_strided_slice %26 {offsets = [8, 16], sizes = [8, 16], strides = [1, 1]} : vector<16x48xf32> to vector<8x16xf32>
    %c25 = arith.constant 25 : index
    %c0_46 = arith.constant 0 : index
    %52 = tpu.strided_load %arg12[%c25, %c0_46] {strides = array<i32: 3, 1>} : memref<48x16xf32, #tpu.memory_space<vmem>>, vector<8x16xf32>
    tpu.strided_store %arg12[%c25, %c0_46], %51 {strides = array<i32: 3, 1>} : memref<48x16xf32, #tpu.memory_space<vmem>>, vector<8x16xf32>
    %53 = vector.extract_strided_slice %10 {offsets = [8, 16], sizes = [8, 16], strides = [1, 1]} : vector<16x48xf32> to vector<8x16xf32>
    %c25_47 = arith.constant 25 : index
    %c0_48 = arith.constant 0 : index
    %54 = tpu.strided_load %arg13[%c25_47, %c0_48] {strides = array<i32: 3, 1>} : memref<48x16xf32, #tpu.memory_space<vmem>>, vector<8x16xf32>
    tpu.strided_store %arg13[%c25_47, %c0_48], %53 {strides = array<i32: 3, 1>} : memref<48x16xf32, #tpu.memory_space<vmem>>, vector<8x16xf32>
    %55 = vector.extract_strided_slice %18 {offsets = [8, 16], sizes = [8, 16], strides = [1, 1]} : vector<16x48xf32> to vector<8x16xf32>
    %c25_49 = arith.constant 25 : index
    %c0_50 = arith.constant 0 : index
    %56 = tpu.strided_load %arg14[%c25_49, %c0_50] {strides = array<i32: 3, 1>} : memref<48x16xf32, #tpu.memory_space<vmem>>, vector<8x16xf32>
    tpu.strided_store %arg14[%c25_49, %c0_50], %55 {strides = array<i32: 3, 1>} : memref<48x16xf32, #tpu.memory_space<vmem>>, vector<8x16xf32>
    %57 = vector.extract_strided_slice %26 {offsets = [8, 32], sizes = [8, 16], strides = [1, 1]} : vector<16x48xf32> to vector<8x16xf32>
    %c26 = arith.constant 26 : index
    %c0_51 = arith.constant 0 : index
    %58 = tpu.strided_load %arg12[%c26, %c0_51] {strides = array<i32: 3, 1>} : memref<48x16xf32, #tpu.memory_space<vmem>>, vector<8x16xf32>
    tpu.strided_store %arg12[%c26, %c0_51], %57 {strides = array<i32: 3, 1>} : memref<48x16xf32, #tpu.memory_space<vmem>>, vector<8x16xf32>
    %59 = vector.extract_strided_slice %10 {offsets = [8, 32], sizes = [8, 16], strides = [1, 1]} : vector<16x48xf32> to vector<8x16xf32>
    %c26_52 = arith.constant 26 : index
    %c0_53 = arith.constant 0 : index
    %60 = tpu.strided_load %arg13[%c26_52, %c0_53] {strides = array<i32: 3, 1>} : memref<48x16xf32, #tpu.memory_space<vmem>>, vector<8x16xf32>
    tpu.strided_store %arg13[%c26_52, %c0_53], %59 {strides = array<i32: 3, 1>} : memref<48x16xf32, #tpu.memory_space<vmem>>, vector<8x16xf32>
    %61 = vector.extract_strided_slice %18 {offsets = [8, 32], sizes = [8, 16], strides = [1, 1]} : vector<16x48xf32> to vector<8x16xf32>
    %c26_54 = arith.constant 26 : index
    %c0_55 = arith.constant 0 : index
    %62 = tpu.strided_load %arg14[%c26_54, %c0_55] {strides = array<i32: 3, 1>} : memref<48x16xf32, #tpu.memory_space<vmem>>, vector<8x16xf32>
    tpu.strided_store %arg14[%c26_54, %c0_55], %61 {strides = array<i32: 3, 1>} : memref<48x16xf32, #tpu.memory_space<vmem>>, vector<8x16xf32>
    %c0_56 = arith.constant 0 : index
    %c0_57 = arith.constant 0 : index
    %63 = vector.load %arg12[%c0_56, %c0_57] : memref<48x16xf32, #tpu.memory_space<vmem>>, vector<48x16xf32>
    %cst_58 = arith.constant 0.44721359 : f32
    %64 = vector.broadcast %cst_58 : f32 to vector<48x16xf32>
    %65 = arith.mulf %63, %64 : vector<48x16xf32>
    %66 = vector.shape_cast %65 : vector<48x16xf32> to vector<6x8x16xf32>
    %67 = arith.truncf %66 : vector<6x8x16xf32> to vector<6x8x16xbf16>
    %c0_59 = arith.constant 0 : index
    %c0_60 = arith.constant 0 : index
    %68 = vector.load %arg13[%c0_59, %c0_60] : memref<48x16xf32, #tpu.memory_space<vmem>>, vector<48x16xf32>
    %69 = vector.shape_cast %68 : vector<48x16xf32> to vector<6x8x16xf32>
    %70 = arith.truncf %69 : vector<6x8x16xf32> to vector<6x8x16xbf16>
    %c0_61 = arith.constant 0 : index
    %c0_62 = arith.constant 0 : index
    %71 = vector.load %arg14[%c0_61, %c0_62] : memref<48x16xf32, #tpu.memory_space<vmem>>, vector<48x16xf32>
    %72 = vector.shape_cast %71 : vector<48x16xf32> to vector<6x8x16xf32>
    %73 = arith.truncf %72 : vector<6x8x16xf32> to vector<6x8x16xbf16>
    "tpu.trace_start"() <{level = 10 : i32, message = "gqd,gkd->gqk"}> : () -> ()
    %cst_63 = arith.constant dense<0.000000e+00> : vector<6x8x8xf32>
    %74 = tpu.matmul %67, %70, %cst_63 {dimension_numbers = #tpu.dot_dimension_numbers<[2], [2], [1], [1], [0, 0, 0, 1, 1, 1], [0], [0]>} : vector<6x8x16xbf16>, vector<6x8x16xbf16>, vector<6x8x8xf32> -> vector<6x8x8xf32>
    "tpu.trace_stop"() : () -> ()
    %cst_64 = arith.constant dense<0xFF800000> : vector<6x8xf32>
    %75 = vector.multi_reduction <maximumf>, %74, %cst_64 [2] : vector<6x8x8xf32> to vector<6x8xf32>
    %76 = vector.shape_cast %75 : vector<6x8xf32> to vector<6x8x1xf32>
    %77 = vector.broadcast %76 : vector<6x8x1xf32> to vector<6x8x8xf32>
    %78 = arith.subf %74, %77 : vector<6x8x8xf32>
    %79 = math.exp %78 : vector<6x8x8xf32>
    %cst_65 = arith.constant dense<0.000000e+00> : vector<6x8xf32>
    %80 = vector.multi_reduction <add>, %79, %cst_65 [2] : vector<6x8x8xf32> to vector<6x8xf32>
    %81 = vector.shape_cast %80 : vector<6x8xf32> to vector<6x8x1xf32>
    %82 = tpu.reciprocal %81 {approx = true} : vector<6x8x1xf32> -> vector<6x8x1xf32>
    %83 = vector.broadcast %82 : vector<6x8x1xf32> to vector<6x8x8xf32>
    %84 = arith.mulf %79, %83 : vector<6x8x8xf32>
    %85 = vector.shape_cast %84 : vector<6x8x8xf32> to vector<48x8xf32>
    %86 = arith.truncf %85 : vector<48x8xf32> to vector<48x8xbf16>
    %c0_66 = arith.constant 0 : index
    %c0_67 = arith.constant 0 : index
    %87 = vector.load %arg11[%c0_66, %c0_67] : memref<48x8xbf16, #tpu.memory_space<vmem>>, vector<48x8xbf16>
    tpu.vector_store %arg11[%c0_66, %c0_67], %86 {strides = array<i32>} : memref<48x8xbf16, #tpu.memory_space<vmem>>, vector<48x8xbf16>,
    %88 = arith.truncf %84 : vector<6x8x8xf32> to vector<6x8x8xbf16>
    "tpu.trace_start"() <{level = 10 : i32, message = "gqk,gkd->gqd"}> : () -> ()
    %cst_68 = arith.constant dense<0.000000e+00> : vector<6x8x16xf32>
    %89 = tpu.matmul %88, %73, %cst_68 {dimension_numbers = #tpu.dot_dimension_numbers<[2], [1], [1], [2], [0, 0, 0, 1, 1, 2], [0], [0]>} : vector<6x8x8xbf16>, vector<6x8x16xbf16>, vector<6x8x16xf32> -> vector<6x8x16xf32>
    "tpu.trace_stop"() : () -> ()
    %90 = vector.shape_cast %89 : vector<6x8x16xf32> to vector<48x16xf32>
    %c0_69 = arith.constant 0 : index
    %c0_70 = arith.constant 0 : index
    %91 = vector.load %arg12[%c0_69, %c0_70] : memref<48x16xf32, #tpu.memory_space<vmem>>, vector<48x16xf32>
    tpu.vector_store %arg12[%c0_69, %c0_70], %90 {strides = array<i32>} : memref<48x16xf32, #tpu.memory_space<vmem>>, vector<48x16xf32>,
    %c0_71 = arith.constant 0 : index
    %c0_72 = arith.constant 0 : index
    %92 = tpu.strided_load %arg12[%c0_71, %c0_72] {strides = array<i32: 3, 1>} : memref<48x16xf32, #tpu.memory_space<vmem>>, vector<8x16xf32>
    %c0_73 = arith.constant 0 : index
    %c0_74 = arith.constant 0 : index
    %93 = vector.load %arg15[%c0_73, %c0_74] : memref<16x48xf32, #tpu.memory_space<vmem>>, vector<8x16xf32>
    tpu.vector_store %arg15[%c0_73, %c0_74], %92 {strides = array<i32>} : memref<16x48xf32, #tpu.memory_space<vmem>>, vector<8x16xf32>,
    %c1_75 = arith.constant 1 : index
    %c0_76 = arith.constant 0 : index
    %94 = tpu.strided_load %arg12[%c1_75, %c0_76] {strides = array<i32: 3, 1>} : memref<48x16xf32, #tpu.memory_space<vmem>>, vector<8x16xf32>
    %c0_77 = arith.constant 0 : index
    %c16 = arith.constant 16 : index
    %95 = vector.load %arg15[%c0_77, %c16] : memref<16x48xf32, #tpu.memory_space<vmem>>, vector<8x16xf32>
    tpu.vector_store %arg15[%c0_77, %c16], %94 {strides = array<i32>} : memref<16x48xf32, #tpu.memory_space<vmem>>, vector<8x16xf32>,
    %c2_78 = arith.constant 2 : index
    %c0_79 = arith.constant 0 : index
    %96 = tpu.strided_load %arg12[%c2_78, %c0_79] {strides = array<i32: 3, 1>} : memref<48x16xf32, #tpu.memory_space<vmem>>, vector<8x16xf32>
    %c0_80 = arith.constant 0 : index
    %c32 = arith.constant 32 : index
    %97 = vector.load %arg15[%c0_80, %c32] : memref<16x48xf32, #tpu.memory_space<vmem>>, vector<8x16xf32>
    tpu.vector_store %arg15[%c0_80, %c32], %96 {strides = array<i32>} : memref<16x48xf32, #tpu.memory_space<vmem>>, vector<8x16xf32>,
    %c24_81 = arith.constant 24 : index
    %c0_82 = arith.constant 0 : index
    %98 = tpu.strided_load %arg12[%c24_81, %c0_82] {strides = array<i32: 3, 1>} : memref<48x16xf32, #tpu.memory_space<vmem>>, vector<8x16xf32>
    %c8 = arith.constant 8 : index
    %c0_83 = arith.constant 0 : index
    %99 = vector.load %arg15[%c8, %c0_83] : memref<16x48xf32, #tpu.memory_space<vmem>>, vector<8x16xf32>
    tpu.vector_store %arg15[%c8, %c0_83], %98 {strides = array<i32>} : memref<16x48xf32, #tpu.memory_space<vmem>>, vector<8x16xf32>,
    %c25_84 = arith.constant 25 : index
    %c0_85 = arith.constant 0 : index
    %100 = tpu.strided_load %arg12[%c25_84, %c0_85] {strides = array<i32: 3, 1>} : memref<48x16xf32, #tpu.memory_space<vmem>>, vector<8x16xf32>
    %c8_86 = arith.constant 8 : index
    %c16_87 = arith.constant 16 : index
    %101 = vector.load %arg15[%c8_86, %c16_87] : memref<16x48xf32, #tpu.memory_space<vmem>>, vector<8x16xf32>
    tpu.vector_store %arg15[%c8_86, %c16_87], %100 {strides = array<i32>} : memref<16x48xf32, #tpu.memory_space<vmem>>, vector<8x16xf32>,
    %c26_88 = arith.constant 26 : index
    %c0_89 = arith.constant 0 : index
    %102 = tpu.strided_load %arg12[%c26_88, %c0_89] {strides = array<i32: 3, 1>} : memref<48x16xf32, #tpu.memory_space<vmem>>, vector<8x16xf32>
    %c8_90 = arith.constant 8 : index
    %c32_91 = arith.constant 32 : index
    %103 = vector.load %arg15[%c8_90, %c32_91] : memref<16x48xf32, #tpu.memory_space<vmem>>, vector<8x16xf32>
    tpu.vector_store %arg15[%c8_90, %c32_91], %102 {strides = array<i32>} : memref<16x48xf32, #tpu.memory_space<vmem>>, vector<8x16xf32>,
    %c0_92 = arith.constant 0 : index
    %c0_93 = arith.constant 0 : index
    %104 = vector.load %arg15[%c0_92, %c0_93] : memref<16x48xf32, #tpu.memory_space<vmem>>, vector<16x48xf32>
    %105 = arith.truncf %104 : vector<16x48xf32> to vector<16x48xbf16>
    %c0_94 = arith.constant 0 : index
    %c0_95 = arith.constant 0 : index
    %106 = vector.load %arg6[%c0_94, %c0_95] : memref<48x48xbf16, #tpu.memory_space<vmem>>, vector<48x48xbf16>
    %cst_96 = arith.constant dense<0.000000e+00> : vector<16x48xf32>
    %107 = tpu.matmul %105, %106, %cst_96 {dimension_numbers = #tpu.dot_dimension_numbers<[1], [0], [0], [1], [0, 0, 1, 1], [], []>} : vector<16x48xbf16>, vector<48x48xbf16>, vector<16x48xf32> -> vector<16x48xf32>
    %c0_97 = arith.constant 0 : index
    %c0_98 = arith.constant 0 : index
    %108 = vector.load %arg7[%c0_97, %c0_98] : memref<1x48xf32, #tpu.memory_space<vmem>>, vector<1x48xf32>
    %109 = vector.broadcast %108 : vector<1x48xf32> to vector<16x48xf32>
    %110 = arith.addf %107, %109 : vector<16x48xf32>
    %111 = arith.addf %110, %2 : vector<16x48xf32>
    %cst_99 = arith.constant dense<0.000000e+00> : vector<16xf32>
    %112 = vector.multi_reduction <add>, %111, %cst_99 [1] : vector<16x48xf32> to vector<16xf32>
    %113 = vector.shape_cast %112 : vector<16xf32> to vector<16x1xf32>
    %cst_100 = arith.constant 4.800000e+01 : f32
    %114 = vector.broadcast %cst_100 : f32 to vector<16x1xf32>
    %115 = arith.divf %113, %114 : vector<16x1xf32>
    %116 = vector.broadcast %115 : vector<16x1xf32> to vector<16x48xf32>
    %117 = arith.subf %111, %116 : vector<16x48xf32>
    %118 = arith.mulf %117, %117 : vector<16x48xf32>
    %cst_101 = arith.constant dense<0.000000e+00> : vector<16xf32>
    %119 = vector.multi_reduction <add>, %118, %cst_101 [1] : vector<16x48xf32> to vector<16xf32>
    %120 = vector.shape_cast %119 : vector<16xf32> to vector<16x1xf32>
    %cst_102 = arith.constant 4.800000e+01 : f32
    %121 = vector.broadcast %cst_102 : f32 to vector<16x1xf32>
    %122 = arith.divf %120, %121 : vector<16x1xf32>
    %123 = vector.broadcast %115 : vector<16x1xf32> to vector<16x48xf32>
    %124 = arith.subf %111, %123 : vector<16x48xf32>
    %cst_103 = arith.constant 9.99999974E-6 : f32
    %125 = vector.broadcast %cst_103 : f32 to vector<16x1xf32>
    %126 = arith.addf %122, %125 : vector<16x1xf32>
    %127 = math.rsqrt %126 : vector<16x1xf32>
    %128 = vector.broadcast %127 : vector<16x1xf32> to vector<16x48xf32>
    %129 = arith.mulf %124, %128 : vector<16x48xf32>
    %c0_104 = arith.constant 0 : index
    %c0_105 = arith.constant 0 : index
    %130 = vector.load %arg8[%c0_104, %c0_105] : memref<1x48xf32, #tpu.memory_space<vmem>>, vector<1x48xf32>
    %131 = vector.broadcast %130 : vector<1x48xf32> to vector<16x48xf32>
    %132 = arith.mulf %129, %131 : vector<16x48xf32>
    %c0_106 = arith.constant 0 : index
    %c0_107 = arith.constant 0 : index
    %133 = vector.load %arg9[%c0_106, %c0_107] : memref<1x48xf32, #tpu.memory_space<vmem>>, vector<1x48xf32>
    %134 = vector.broadcast %133 : vector<1x48xf32> to vector<16x48xf32>
    %135 = arith.addf %132, %134 : vector<16x48xf32>
    %c0_108 = arith.constant 0 : index
    %c0_109 = arith.constant 0 : index
    %136 = vector.load %arg10[%c0_108, %c0_109] : memref<16x48xf32, #tpu.memory_space<vmem>>, vector<16x48xf32>
    tpu.vector_store %arg10[%c0_108, %c0_109], %135 {strides = array<i32>} : memref<16x48xf32, #tpu.memory_space<vmem>>, vector<16x48xf32>,
    return
  }
  func.func @transform_0(%arg0: i32) -> (i32, i32) {
    %c0_i32 = arith.constant 0 : i32
    %c0_i32_0 = arith.constant 0 : i32
    return %arg0, %c0_i32 : i32, i32
  }
  func.func @transform_1(%arg0: i32) -> (i32, i32) {
    %c0_i32 = arith.constant 0 : i32
    %c0_i32_0 = arith.constant 0 : i32
    return %arg0, %c0_i32 : i32, i32
  }
  func.func @transform_2(%arg0: i32) -> (i32, i32) {
    %c0_i32 = arith.constant 0 : i32
    %c0_i32_0 = arith.constant 0 : i32
    return %arg0, %c0_i32 : i32, i32
  }
  func.func @transform_3(%arg0: i32) -> (i32, i32, i32) {
    %c0_i32 = arith.constant 0 : i32
    %c0_i32_0 = arith.constant 0 : i32
    %c0_i32_1 = arith.constant 0 : i32
    %c0_i32_2 = arith.constant 0 : i32
    return %c0_i32, %c0_i32_0, %c0_i32_1 : i32, i32, i32
  }
  func.func @transform_4(%arg0: i32) -> (i32, i32, i32) {
    %c0_i32 = arith.constant 0 : i32
    %c0_i32_0 = arith.constant 0 : i32
    %c0_i32_1 = arith.constant 0 : i32
    %c0_i32_2 = arith.constant 0 : i32
    return %c0_i32, %c0_i32_0, %c0_i32_1 : i32, i32, i32
  }
  func.func @transform_5(%arg0: i32) -> (i32, i32) {
    %c0_i32 = arith.constant 0 : i32
    %c0_i32_0 = arith.constant 0 : i32
    %c0_i32_1 = arith.constant 0 : i32
    return %c0_i32, %c0_i32_0 : i32, i32
  }
  func.func @transform_6(%arg0: i32) -> (i32, i32) {
    %c0_i32 = arith.constant 0 : i32
    %c0_i32_0 = arith.constant 0 : i32
    %c0_i32_1 = arith.constant 0 : i32
    return %c0_i32, %c0_i32_0 : i32, i32
  }
  func.func @transform_7(%arg0: i32) -> (i32, i32) {
    %c0_i32 = arith.constant 0 : i32
    %c0_i32_0 = arith.constant 0 : i32
    %c0_i32_1 = arith.constant 0 : i32
    return %c0_i32, %c0_i32_0 : i32, i32
  }
  func.func @transform_8(%arg0: i32) -> (i32, i32) {
    %c0_i32 = arith.constant 0 : i32
    %c0_i32_0 = arith.constant 0 : i32
    %c0_i32_1 = arith.constant 0 : i32
    return %c0_i32, %c0_i32_0 : i32, i32
  }
  func.func @transform_9(%arg0: i32) -> (i32, i32) {
    %c0_i32 = arith.constant 0 : i32
    %c0_i32_0 = arith.constant 0 : i32
    return %arg0, %c0_i32 : i32, i32
  }
  func.func @transform_10(%arg0: i32) -> (i32, i32) {
    %c0_i32 = arith.constant 0 : i32
    %c0_i32_0 = arith.constant 0 : i32
    return %arg0, %c0_i32 : i32, i32
  }
}

</mosaic_0001>

<llo_original>
// kernel: tpu_custom_call.1
$region0: #{tpu_custom_call.1}
  #allocation0 [shape = 'u32[]', space=smem, size = 0x4, offset = 0x4, fixed_abs, tag = 'smem constant byte address 0x4 - core index']
  #allocation1 [shape = 'u32[144,128]{1,0:T(1,128)}', space=vmem, size = 0x12000, scoped, tag = 'internal scratch']
  #allocation2 [shape = 'f32[48,16]{1,0:T(8,128)}', space=vmem, size = 0x6000, scoped, tag = 'scratch operand']
  #allocation3 [shape = 'f32[48,16]{1,0:T(8,128)}', space=vmem, size = 0x6000, scoped, tag = 'scratch operand']
  #allocation4 [shape = 'f32[48,16]{1,0:T(8,128)}', space=vmem, size = 0x6000, scoped, tag = 'scratch operand']
  #allocation5 [shape = 'f32[16,48]{1,0:T(8,128)}', space=vmem, size = 0x2000, scoped, tag = 'scratch operand']
  %s0 = inlined_call_operand.hbm [shape: f32[16,48], index: 0, kind: input, shape index: {}]
  %s1 = inlined_call_operand.hbm [shape: f32[16,48], index: 1, kind: input, shape index: {}]
  %s2 = inlined_call_operand.hbm [shape: f32[16,48], index: 2, kind: input, shape index: {}]
  %s3 = inlined_call_operand.hbm [shape: bf16[3,48,48], index: 3, kind: input, shape index: {}]
  %s4 = inlined_call_operand.vmem [shape: f32[3,1,48], index: 4, kind: input, shape index: {}]
  %s5 = inlined_call_operand.hbm [shape: bf16[48,48], index: 5, kind: input, shape index: {}]
  %s6 = inlined_call_operand.vmem [shape: f32[1,48], index: 6, kind: input, shape index: {}]
  %s7 = inlined_call_operand.vmem [shape: f32[1,48], index: 7, kind: input, shape index: {}]
  %s8 = inlined_call_operand.vmem [shape: f32[1,48], index: 8, kind: input, shape index: {}]
  %s9 = inlined_call_operand.hbm [shape: f32[16,48], index: 9, kind: output, shape index: {0}]
  %s10 = inlined_call_operand.vmem [shape: bf16[48,8], index: 10, kind: output, shape index: {1}]
  %11 = xla_tuple %s9, %s10
  %s12 = sld [smem:[#allocation0]]
  $region74: #{tpu_custom_call.1} parent=0
    _
  %s14 = ssub.s32 1, %s12
  %s15 = scalar_select 0, %s14, %s12
  $region1: #{tpu_custom_call.1} parent=0
    #allocation6 [shape = 'u8[8192]{0}', space=vmem, size = 0x2000, scoped, tag = 'input window, operand 0, single buffered']
    #allocation7 [shape = 's32[1]{0}', space=sflag, size = 0x4, scoped, tag = 'scoped memory for tpu_custom_call.1']
    #allocation8 [shape = 's32[1]{0}', space=sflag, size = 0x4, scoped, tag = 'scoped memory for tpu_custom_call.1']
    #allocation9 [shape = 'u8[8192]{0}', space=vmem, size = 0x2000, scoped, tag = 'input window, operand 1, single buffered']
    #allocation10 [shape = 's32[1]{0}', space=sflag, size = 0x4, scoped, tag = 'scoped memory for tpu_custom_call.1']
    #allocation11 [shape = 'u8[8192]{0}', space=vmem, size = 0x2000, scoped, tag = 'input window, operand 2, single buffered']
    #allocation12 [shape = 'u8[36864]{0}', space=vmem, size = 0x9000, scoped, tag = 'input window, operand 3, single buffered']
    #allocation13 [shape = 's32[1]{0}', space=sflag, size = 0x4, scoped, tag = 'scoped memory for tpu_custom_call.1']
    #allocation14 [shape = 'u8[12288]{0}', space=vmem, size = 0x3000, scoped, tag = 'input window, operand 5, single buffered']
    #allocation15 [shape = 'u8[8192]{0}', space=vmem, size = 0x2000, scoped, tag = 'output window, operand 0, single buffered']
    %16 = vsyncpa [#allocation7], 0
    %17 = vsyncpa [#allocation10], 0
    %18 = vsyncpa [#allocation13], 0
    %19 = vsyncpa [#allocation8], 0
    // Predicated region
    $region2: #{tpu_custom_call.1} parent=1 // pred_check
      _
    $region3: #{tpu_custom_call.1} parent=1 // pred_check_branch
      %21 = sbr.rel (0) target = $region5
    $region4: #{tpu_custom_call.1} parent=1 // pred_region
      %s23 = ssub.s32 256, 256
      %24 = vsyncadd [#allocation7], %s23
      %s25 = sshll.u32 [#allocation6], 4
      %s26 = int_to_ptr.vmem [resolvable:$true] %s25
      %31 = dma.hbm_to_vmem [thread:$0]  %s0, 256, %s26, [#allocation7], 128, 128, 8
    $region5: #{tpu_custom_call.1} parent=1 // pred_fallthru
      _
    // Predicated region
    $region6: #{tpu_custom_call.1} parent=1 // pred_check
      _
    $region7: #{tpu_custom_call.1} parent=1 // pred_check_branch
      %33 = sbr.rel (0) target = $region9
    $region8: #{tpu_custom_call.1} parent=1 // pred_region
      %s35 = ssub.s32 256, 256
      %36 = vsyncadd [#allocation10], %s35
      %s37 = sshll.u32 [#allocation9], 4
      %s38 = int_to_ptr.vmem [resolvable:$true] %s37
      %43 = dma.hbm_to_vmem [thread:$0]  %s1, 256, %s38, [#allocation10], 128, 128, 8
    $region9: #{tpu_custom_call.1} parent=1 // pred_fallthru
      _
    // Predicated region
    $region10: #{tpu_custom_call.1} parent=1 // pred_check
      _
    $region11: #{tpu_custom_call.1} parent=1 // pred_check_branch
      %45 = sbr.rel (0) target = $region13
    $region12: #{tpu_custom_call.1} parent=1 // pred_region
      %s47 = ssub.s32 256, 256
      %48 = vsyncadd [#allocation10], %s47
      %s49 = sshll.u32 [#allocation11], 4
      %s50 = int_to_ptr.vmem [resolvable:$true] %s49
      %55 = dma.hbm_to_vmem [thread:$0]  %s2, 256, %s50, [#allocation10], 128, 128, 8
    $region13: #{tpu_custom_call.1} parent=1 // pred_fallthru
      _
    // Predicated region
    $region14: #{tpu_custom_call.1} parent=1 // pred_check
      _
    $region15: #{tpu_custom_call.1} parent=1 // pred_check_branch
      %57 = sbr.rel (0) target = $region17
    $region16: #{tpu_custom_call.1} parent=1 // pred_region
      %s59 = ssub.s32 1152, 1152
      %60 = vsyncadd [#allocation13], %s59
      %s61 = sshll.u32 [#allocation12], 4
      %s62 = int_to_ptr.vmem [resolvable:$true] %s61
      %67 = dma.hbm_to_vmem [thread:$0]  %s3, 1152, %s62, [#allocation13], 64, 64, 4
    $region17: #{tpu_custom_call.1} parent=1 // pred_fallthru
      _
    // Predicated region
    $region18: #{tpu_custom_call.1} parent=1 // pred_check
      _
    $region19: #{tpu_custom_call.1} parent=1 // pred_check_branch
      %69 = sbr.rel (0) target = $region21
    $region20: #{tpu_custom_call.1} parent=1 // pred_region
      _
    $region21: #{tpu_custom_call.1} parent=1 // pred_fallthru
      _
    // Predicated region
    $region22: #{tpu_custom_call.1} parent=1 // pred_check
      _
    $region23: #{tpu_custom_call.1} parent=1 // pred_check_branch
      %71 = sbr.rel (0) target = $region25
    $region24: #{tpu_custom_call.1} parent=1 // pred_region
      %s73 = ssub.s32 384, 384
      %74 = vsyncadd [#allocation13], %s73
      %s75 = sshll.u32 [#allocation14], 4
      %s76 = int_to_ptr.vmem [resolvable:$true] %s75
      %81 = dma.hbm_to_vmem [thread:$0]  %s5, 384, %s76, [#allocation13], 64, 64, 4
    $region25: #{tpu_custom_call.1} parent=1 // pred_fallthru
      _
    // Predicated region
    $region26: #{tpu_custom_call.1} parent=1 // pred_check
      _
    $region27: #{tpu_custom_call.1} parent=1 // pred_check_branch
      %83 = sbr.rel (0) target = $region29
    $region28: #{tpu_custom_call.1} parent=1 // pred_region
      _
    $region29: #{tpu_custom_call.1} parent=1 // pred_fallthru
      _
    // Predicated region
    $region30: #{tpu_custom_call.1} parent=1 // pred_check
      _
    $region31: #{tpu_custom_call.1} parent=1 // pred_check_branch
      %85 = sbr.rel (0) target = $region33
    $region32: #{tpu_custom_call.1} parent=1 // pred_region
      _
    $region33: #{tpu_custom_call.1} parent=1 // pred_fallthru
      _
    // Predicated region
    $region34: #{tpu_custom_call.1} parent=1 // pred_check
      _
    $region35: #{tpu_custom_call.1} parent=1 // pred_check_branch
      %87 = sbr.rel (0) target = $region37
    $region36: #{tpu_custom_call.1} parent=1 // pred_region
      _
    $region37: #{tpu_custom_call.1} parent=1 // pred_fallthru
      _
    // Predicated region
    $region38: #{tpu_custom_call.1} parent=1 // pred_check
      _
    $region39: #{tpu_custom_call.1} parent=1 // pred_check_branch
      %89 = sbr.rel (0) target = $region41
    $region40: #{tpu_custom_call.1} parent=1 // pred_region
      %90 = dma.done [#allocation7], 256
    $region41: #{tpu_custom_call.1} parent=1 // pred_fallthru
      _
    // Predicated region
    $region42: #{tpu_custom_call.1} parent=1 // pred_check
      _
    $region43: #{tpu_custom_call.1} parent=1 // pred_check_branch
      %92 = sbr.rel (0) target = $region45
    $region44: #{tpu_custom_call.1} parent=1 // pred_region
      %93 = dma.done [#allocation10], 256
    $region45: #{tpu_custom_call.1} parent=1 // pred_fallthru
      _
    // Predicated region
    $region46: #{tpu_custom_call.1} parent=1 // pred_check
      _
    $region47: #{tpu_custom_call.1} parent=1 // pred_check_branch
      %95 = sbr.rel (0) target = $region49
    $region48: #{tpu_custom_call.1} parent=1 // pred_region
      %96 = dma.done [#allocation10], 256
    $region49: #{tpu_custom_call.1} parent=1 // pred_fallthru
      _
    // Predicated region
    $region50: #{tpu_custom_call.1} parent=1 // pred_check
      _
    $region51: #{tpu_custom_call.1} parent=1 // pred_check_branch
      %98 = sbr.rel (0) target = $region53
    $region52: #{tpu_custom_call.1} parent=1 // pred_region
      %99 = dma.done [#allocation13], 1152
    $region53: #{tpu_custom_call.1} parent=1 // pred_fallthru
      _
    // Predicated region
    $region54: #{tpu_custom_call.1} parent=1 // pred_check
      _
    $region55: #{tpu_custom_call.1} parent=1 // pred_check_branch
      %101 = sbr.rel (0) target = $region57
    $region56: #{tpu_custom_call.1} parent=1 // pred_region
      %102 = dma.done [#allocation13], 384
    $region57: #{tpu_custom_call.1} parent=1 // pred_fallthru
      _
    %v104 = vld [vmem:[#allocation6] sm:$0xff]
    %v105 = vld [vmem:[#allocation6 + $0x8] sm:$0xff]
    %v106 = vld [vmem:[#allocation9] sm:$0xff]
    %v107 = vld [vmem:[#allocation9 + $0x8] sm:$0xff]
    %v108 = vld [vmem:[#allocation11] sm:$0xff]
    %v109 = vld [vmem:[#allocation11 + $0x8] sm:$0xff]
    %v110 = vpack.c.bf16 %v105, %v104
    %v111 = vld [vmem:[#allocation12] sm:$0xf]
    %v112 = vld [vmem:[#allocation12 + $0x4] sm:$0xf]
    %v113 = vld [vmem:[#allocation12 + $0x8] sm:$0xf]
    %v114 = vld [vmem:[#allocation12 + $0xc] sm:$0xf]
    %v115 = vld [vmem:[#allocation12 + $0x10] sm:$0xf]
    %v116 = vld [vmem:[#allocation12 + $0x14] sm:$0xf]
    %v117 = vld [vmem:[%s4] sm:$0x1]
    %v119 = vlaneseq
    %v120 = vshrl.u32 %v119, 7
    %v121 = vsub.s32 0, %v120
    %v122 = vrot.slane %v117, %v121
    %v130 = vunpack.c.l.b16 %v111
    %v131 = vunpack.c.l.b16 %v112
    %v132 = vunpack.c.l.b16 %v113
    %v133 = vunpack.c.l.b16 %v114
    %v134 = vunpack.c.l.b16 %v115
    %v135 = vunpack.c.l.b16 %v116
    %v136 = vpack.c.b16 %v131, %v130
    %v137 = vpack.c.b16 %v133, %v132
    %v138 = vpack.c.b16 %v135, %v134
    %vm142 = vcmask 392192
    %v144 = vsel %vm142, %v110, 0
    %146 = vmatprep.subr.bf16.mxu0 0
    %147 = vmatpush1.bf16.msra.mxu0 %v136
    %148 = vmatprep.subr.bf16.mxu0 0
    %149 = vmatpush1.bf16.msra.mxu0 %v137
    %150 = vmatprep.subr.bf16.mxu0 0
    %151 = vmatpush1.bf16.msra.mxu0 %v138
    %152 = vmatprep.subr.bf16.mxu0 0
    %153 = vmatpush1.bf16.msra.mxu0 0
    %154 = vmatprep.subr.bf16.mxu0 0
    %155 = vmatpush1.bf16.msra.mxu0 0
    %156 = vmatprep.subr.bf16.mxu0 0
    %157 = vmatpush1.bf16.msra.mxu0 0
    %158 = vmatprep.subr.bf16.mxu0 0
    %159 = vmatpush1.bf16.msra.mxu0 0
    %160 = vmatprep.subr.bf16.mxu0 0
    %161 = vmatpush1.bf16.msra.mxu0 0
    %162 = vmatprep.subr.bf16.mxu0 0
    %163 = vmatpush1.bf16.msra.mxu0 0
    %164 = vmatprep.subr.bf16.mxu0 0
    %165 = vmatpush1.bf16.msra.mxu0 0
    %166 = vmatprep.subr.bf16.mxu0 0
    %167 = vmatpush1.bf16.msra.mxu0 0
    %168 = vmatprep.subr.bf16.mxu0 0
    %169 = vmatpush1.bf16.msra.mxu0 0
    %170 = vmatprep.subr.bf16.mxu0 0
    %171 = vmatpush1.bf16.msra.mxu0 0
    %172 = vmatprep.subr.bf16.mxu0 0
    %173 = vmatpush1.bf16.msra.mxu0 0
    %174 = vmatprep.subr.bf16.mxu0 0
    %175 = vmatpush1.bf16.msra.mxu0 0
    %176 = vmatprep.subr.bf16.mxu0 0
    %177 = vmatpush1.bf16.msra.mxu0 0
    %178 = vmatprep.mubr.bf16.mxu0 0
    %179 = vmatmul.mubr.bf16.gmra.mrb[0].mxu0 %v144
    %v180 = vpop.f32.mrb[0].mxu0
    %v181 = vadd.f32 %v122, %v180
    %v182 = vpop.f32.mrb[0].mxu0
    %v183 = vpop.f32.mrb[0].mxu0
    %v184 = vadd.f32 %v122, %v183
    %v185 = vpop.f32.mrb[0].mxu0
    %186 = vdwg.mxu0
    %v187 = vpack.c.bf16 %v107, %v106
    %s188 = scalar_lea.vmem [#allocation12], 24
    %v189 = vld [vmem:[%s188] sm:$0xf]
    %v190 = vld [vmem:[%s188 + $0x4] sm:$0xf]
    %v191 = vld [vmem:[%s188 + $0x8] sm:$0xf]
    %v192 = vld [vmem:[%s188 + $0xc] sm:$0xf]
    %v193 = vld [vmem:[%s188 + $0x10] sm:$0xf]
    %v194 = vld [vmem:[%s188 + $0x14] sm:$0xf]
    %s195 = scalar_lea.vmem %s4, 1
    %v196 = vld [vmem:[%s195] sm:$0x1]
    %v198 = vlaneseq
    %v199 = vshrl.u32 %v198, 7
    %v200 = vsub.s32 0, %v199
    %v201 = vrot.slane %v196, %v200
    %v209 = vunpack.c.l.b16 %v189
    %v210 = vunpack.c.l.b16 %v190
    %v211 = vunpack.c.l.b16 %v191
    %v212 = vunpack.c.l.b16 %v192
    %v213 = vunpack.c.l.b16 %v193
    %v214 = vunpack.c.l.b16 %v194
    %v215 = vpack.c.b16 %v210, %v209
    %v216 = vpack.c.b16 %v212, %v211
    %v217 = vpack.c.b16 %v214, %v213
    %v222 = vsel %vm142, %v187, 0
    %224 = vmatprep.subr.bf16.mxu0 0
    %225 = vmatpush1.bf16.msra.mxu0 %v215
    %226 = vmatprep.subr.bf16.mxu0 0
    %227 = vmatpush1.bf16.msra.mxu0 %v216
    %228 = vmatprep.subr.bf16.mxu0 0
    %229 = vmatpush1.bf16.msra.mxu0 %v217
    %230 = vmatprep.subr.bf16.mxu0 0
    %231 = vmatpush1.bf16.msra.mxu0 0
    %232 = vmatprep.subr.bf16.mxu0 0
    %233 = vmatpush1.bf16.msra.mxu0 0
    %234 = vmatprep.subr.bf16.mxu0 0
    %235 = vmatpush1.bf16.msra.mxu0 0
    %236 = vmatprep.subr.bf16.mxu0 0
    %237 = vmatpush1.bf16.msra.mxu0 0
    %238 = vmatprep.subr.bf16.mxu0 0
    %239 = vmatpush1.bf16.msra.mxu0 0
    %240 = vmatprep.subr.bf16.mxu0 0
    %241 = vmatpush1.bf16.msra.mxu0 0
    %242 = vmatprep.subr.bf16.mxu0 0
    %243 = vmatpush1.bf16.msra.mxu0 0
    %244 = vmatprep.subr.bf16.mxu0 0
    %245 = vmatpush1.bf16.msra.mxu0 0
    %246 = vmatprep.subr.bf16.mxu0 0
    %247 = vmatpush1.bf16.msra.mxu0 0
    %248 = vmatprep.subr.bf16.mxu0 0
    %249 = vmatpush1.bf16.msra.mxu0 0
    %250 = vmatprep.subr.bf16.mxu0 0
    %251 = vmatpush1.bf16.msra.mxu0 0
    %252 = vmatprep.subr.bf16.mxu0 0
    %253 = vmatpush1.bf16.msra.mxu0 0
    %254 = vmatprep.subr.bf16.mxu0 0
    %255 = vmatpush1.bf16.msra.mxu0 0
    %256 = vmatprep.mubr.bf16.mxu0 0
    %257 = vmatmul.mubr.bf16.gmra.mrb[0].mxu0 %v222
    %v258 = vpop.f32.mrb[0].mxu0
    %v259 = vadd.f32 %v201, %v258
    %v260 = vpop.f32.mrb[0].mxu0
    %v261 = vpop.f32.mrb[0].mxu0
    %v262 = vadd.f32 %v201, %v261
    %v263 = vpop.f32.mrb[0].mxu0
    %264 = vdwg.mxu0
    %v265 = vpack.c.bf16 %v109, %v108
    %s266 = scalar_lea.vmem [#allocation12], 48
    %v267 = vld [vmem:[%s266] sm:$0xf]
    %v268 = vld [vmem:[%s266 + $0x4] sm:$0xf]
    %v269 = vld [vmem:[%s266 + $0x8] sm:$0xf]
    %v270 = vld [vmem:[%s266 + $0xc] sm:$0xf]
    %v271 = vld [vmem:[%s266 + $0x10] sm:$0xf]
    %v272 = vld [vmem:[%s266 + $0x14] sm:$0xf]
    %s273 = scalar_lea.vmem %s4, 2
    %v274 = vld [vmem:[%s273] sm:$0x1]
    %v276 = vlaneseq
    %v277 = vshrl.u32 %v276, 7
    %v278 = vsub.s32 0, %v277
    %v279 = vrot.slane %v274, %v278
    %v287 = vunpack.c.l.b16 %v267
    %v288 = vunpack.c.l.b16 %v268
    %v289 = vunpack.c.l.b16 %v269
    %v290 = vunpack.c.l.b16 %v270
    %v291 = vunpack.c.l.b16 %v271
    %v292 = vunpack.c.l.b16 %v272
    %v293 = vpack.c.b16 %v288, %v287
    %v294 = vpack.c.b16 %v290, %v289
    %v295 = vpack.c.b16 %v292, %v291
    %v300 = vsel %vm142, %v265, 0
    %302 = vmatprep.subr.bf16.mxu0 0
    %303 = vmatpush1.bf16.msra.mxu0 %v293
    %304 = vmatprep.subr.bf16.mxu0 0
    %305 = vmatpush1.bf16.msra.mxu0 %v294
    %306 = vmatprep.subr.bf16.mxu0 0
    %307 = vmatpush1.bf16.msra.mxu0 %v295
    %308 = vmatprep.subr.bf16.mxu0 0
    %309 = vmatpush1.bf16.msra.mxu0 0
    %310 = vmatprep.subr.bf16.mxu0 0
    %311 = vmatpush1.bf16.msra.mxu0 0
    %312 = vmatprep.subr.bf16.mxu0 0
    %313 = vmatpush1.bf16.msra.mxu0 0
    %314 = vmatprep.subr.bf16.mxu0 0
    %315 = vmatpush1.bf16.msra.mxu0 0
    %316 = vmatprep.subr.bf16.mxu0 0
    %317 = vmatpush1.bf16.msra.mxu0 0
    %318 = vmatprep.subr.bf16.mxu0 0
    %319 = vmatpush1.bf16.msra.mxu0 0
    %320 = vmatprep.subr.bf16.mxu0 0
    %321 = vmatpush1.bf16.msra.mxu0 0
    %322 = vmatprep.subr.bf16.mxu0 0
    %323 = vmatpush1.bf16.msra.mxu0 0
    %324 = vmatprep.subr.bf16.mxu0 0
    %325 = vmatpush1.bf16.msra.mxu0 0
    %326 = vmatprep.subr.bf16.mxu0 0
    %327 = vmatpush1.bf16.msra.mxu0 0
    %328 = vmatprep.subr.bf16.mxu0 0
    %329 = vmatpush1.bf16.msra.mxu0 0
    %330 = vmatprep.subr.bf16.mxu0 0
    %331 = vmatpush1.bf16.msra.mxu0 0
    %332 = vmatprep.subr.bf16.mxu0 0
    %333 = vmatpush1.bf16.msra.mxu0 0
    %334 = vmatprep.mubr.bf16.mxu0 0
    %335 = vmatmul.mubr.bf16.gmra.mrb[0].mxu0 %v300
    %v336 = vpop.f32.mrb[0].mxu0
    %v337 = vadd.f32 %v279, %v336
    %v338 = vpop.f32.mrb[0].mxu0
    %v339 = vpop.f32.mrb[0].mxu0
    %v340 = vadd.f32 %v279, %v339
    %v341 = vpop.f32.mrb[0].mxu0
    %342 = vdwg.mxu0
    %343 = vst [vmem:[#allocation2] ss:$3 sm:$0xff] %v337
    %344 = vst [vmem:[#allocation3] ss:$3 sm:$0xff] %v181
    %345 = vst [vmem:[#allocation4] ss:$3 sm:$0xff] %v259
    %347 = vrot.lane.b32.xlu0 %v337, 112
    %v348 = vpop.permute.xlu0 %347
    %s350 = scalar_lea.vmem [#allocation2], 1
    %351 = vst [vmem:[%s350] ss:$3 sm:$0xff] %v348
    %353 = vrot.lane.b32.xlu0 %v181, 112
    %v354 = vpop.permute.xlu0 %353
    %s356 = scalar_lea.vmem [#allocation3], 1
    %357 = vst [vmem:[%s356] ss:$3 sm:$0xff] %v354
    %359 = vrot.lane.b32.xlu0 %v259, 112
    %v360 = vpop.permute.xlu0 %359
    %s362 = scalar_lea.vmem [#allocation4], 1
    %363 = vst [vmem:[%s362] ss:$3 sm:$0xff] %v360
    %364 = vrot.lane.b32.xlu0 %v337, 96
    %v365 = vpop.permute.xlu0 %364
    %s367 = scalar_lea.vmem [#allocation2], 2
    %368 = vst [vmem:[%s367] ss:$3 sm:$0xff] %v365
    %369 = vrot.lane.b32.xlu0 %v181, 96
    %v370 = vpop.permute.xlu0 %369
    %s372 = scalar_lea.vmem [#allocation3], 2
    %373 = vst [vmem:[%s372] ss:$3 sm:$0xff] %v370
    %374 = vrot.lane.b32.xlu0 %v259, 96
    %v375 = vpop.permute.xlu0 %374
    %s377 = scalar_lea.vmem [#allocation4], 2
    %378 = vst [vmem:[%s377] ss:$3 sm:$0xff] %v375
    %s379 = scalar_lea.vmem [#allocation2], 24
    %380 = vst [vmem:[%s379] ss:$3 sm:$0xff] %v340
    %s381 = scalar_lea.vmem [#allocation3], 24
    %382 = vst [vmem:[%s381] ss:$3 sm:$0xff] %v184
    %s383 = scalar_lea.vmem [#allocation4], 24
    %384 = vst [vmem:[%s383] ss:$3 sm:$0xff] %v262
    %386 = vrot.lane.b32.xlu0 %v340, 112
    %v387 = vpop.permute.xlu0 %386
    %s389 = scalar_lea.vmem [#allocation2], 25
    %390 = vst [vmem:[%s389] ss:$3 sm:$0xff] %v387
    %392 = vrot.lane.b32.xlu0 %v184, 112
    %v393 = vpop.permute.xlu0 %392
    %s395 = scalar_lea.vmem [#allocation3], 25
    %396 = vst [vmem:[%s395] ss:$3 sm:$0xff] %v393
    %398 = vrot.lane.b32.xlu0 %v262, 112
    %v399 = vpop.permute.xlu0 %398
    %s401 = scalar_lea.vmem [#allocation4], 25
    %402 = vst [vmem:[%s401] ss:$3 sm:$0xff] %v399
    %403 = vrot.lane.b32.xlu0 %v340, 96
    %v404 = vpop.permute.xlu0 %403
    %s406 = scalar_lea.vmem [#allocation2], 26
    %407 = vst [vmem:[%s406] ss:$3 sm:$0xff] %v404
    %408 = vrot.lane.b32.xlu0 %v184, 96
    %v409 = vpop.permute.xlu0 %408
    %s411 = scalar_lea.vmem [#allocation3], 26
    %412 = vst [vmem:[%s411] ss:$3 sm:$0xff] %v409
    %413 = vrot.lane.b32.xlu0 %v262, 96
    %v414 = vpop.permute.xlu0 %413
    %s416 = scalar_lea.vmem [#allocation4], 26
    %417 = vst [vmem:[%s416] ss:$3 sm:$0xff] %v414
    %v418 = vld [vmem:[#allocation2] sm:$0xff]
    %v419 = vld [vmem:[#allocation2 + $0x8] sm:$0xff]
    %v420 = vld [vmem:[#allocation2 + $0x10] sm:$0xff]
    %v421 = vld [vmem:[#allocation2 + $0x18] sm:$0xff]
    %v422 = vld [vmem:[#allocation2 + $0x20] sm:$0xff]
    %v423 = vld [vmem:[#allocation2 + $0x28] sm:$0xff]
    %v424 = vmul.f32 %v418, 0.4472136
    %v425 = vmul.f32 %v419, 0.4472136
    %v426 = vmul.f32 %v420, 0.4472136
    %v427 = vmul.f32 %v421, 0.4472136
    %v428 = vmul.f32 %v422, 0.4472136
    %v429 = vmul.f32 %v423, 0.4472136
    %v430 = vpack.c.bf16 %v424, %v424
    %v431 = vpack.c.bf16 %v425, %v425
    %v432 = vpack.c.bf16 %v426, %v426
    %v433 = vpack.c.bf16 %v427, %v427
    %v434 = vpack.c.bf16 %v428, %v428
    %v435 = vpack.c.bf16 %v429, %v429
    %v436 = vld [vmem:[#allocation3] sm:$0xff]
    %v437 = vld [vmem:[#allocation3 + $0x8] sm:$0xff]
    %v438 = vld [vmem:[#allocation3 + $0x10] sm:$0xff]
    %v439 = vld [vmem:[#allocation3 + $0x18] sm:$0xff]
    %v440 = vld [vmem:[#allocation3 + $0x20] sm:$0xff]
    %v441 = vld [vmem:[#allocation3 + $0x28] sm:$0xff]
    %v442 = vpack.c.bf16 %v436, %v436
    %v443 = vpack.c.bf16 %v437, %v437
    %v444 = vpack.c.bf16 %v438, %v438
    %v445 = vpack.c.bf16 %v439, %v439
    %v446 = vpack.c.bf16 %v440, %v440
    %v447 = vpack.c.bf16 %v441, %v441
    %v448 = vld [vmem:[#allocation4] sm:$0xff]
    %v449 = vld [vmem:[#allocation4 + $0x8] sm:$0xff]
    %v450 = vld [vmem:[#allocation4 + $0x10] sm:$0xff]
    %v451 = vld [vmem:[#allocation4 + $0x18] sm:$0xff]
    %v452 = vld [vmem:[#allocation4 + $0x20] sm:$0xff]
    %v453 = vld [vmem:[#allocation4 + $0x28] sm:$0xff]
    %v454 = vpack.c.bf16 %v448, %v448
    %v455 = vpack.c.bf16 %v449, %v449
    %v456 = vpack.c.bf16 %v450, %v450
    %v457 = vpack.c.bf16 %v451, %v451
    %v458 = vpack.c.bf16 %v452, %v452
    %v459 = vpack.c.bf16 %v453, %v453
    %vm460 = vcmask 130048
    %v462 = vsel %vm460, %v430, 0
    %v465 = vsel %vm460, %v442, 0
    %467 = vmatprep.subr.bf16.mxu0 0
    %468 = vmatpush1.bf16.xpose.msra.mxu0 %v465
    %469 = vmatprep.subr.bf16.mxu0 0
    %470 = vmatpush1.bf16.xpose.msra.mxu0 0
    %471 = vmatprep.subr.bf16.mxu0 0
    %472 = vmatpush1.bf16.xpose.msra.mxu0 0
    %473 = vmatprep.subr.bf16.mxu0 0
    %474 = vmatpush1.bf16.xpose.msra.mxu0 0
    %475 = vmatprep.subr.bf16.mxu0 0
    %476 = vmatpush1.bf16.xpose.msra.mxu0 0
    %477 = vmatprep.subr.bf16.mxu0 0
    %478 = vmatpush1.bf16.xpose.msra.mxu0 0
    %479 = vmatprep.subr.bf16.mxu0 0
    %480 = vmatpush1.bf16.xpose.msra.mxu0 0
    %481 = vmatprep.subr.bf16.mxu0 0
    %482 = vmatpush1.bf16.xpose.msra.mxu0 0
    %483 = vmatprep.subr.bf16.mxu0 0
    %484 = vmatpush1.bf16.xpose.msra.mxu0 0
    %485 = vmatprep.subr.bf16.mxu0 0
    %486 = vmatpush1.bf16.xpose.msra.mxu0 0
    %487 = vmatprep.subr.bf16.mxu0 0
    %488 = vmatpush1.bf16.xpose.msra.mxu0 0
    %489 = vmatprep.subr.bf16.mxu0 0
    %490 = vmatpush1.bf16.xpose.msra.mxu0 0
    %491 = vmatprep.subr.bf16.mxu0 0
    %492 = vmatpush1.bf16.xpose.msra.mxu0 0
    %493 = vmatprep.subr.bf16.mxu0 0
    %494 = vmatpush1.bf16.xpose.msra.mxu0 0
    %495 = vmatprep.subr.bf16.mxu0 0
    %496 = vmatpush1.bf16.xpose.msra.mxu0 0
    %497 = vmatprep.subr.bf16.mxu0 0
    %498 = vmatpush1.bf16.xpose.msra.mxu0 0
    %499 = vmatprep.mubr.bf16.mxu0 0
    %500 = vmatmul.mubr.bf16.gmra.mrb[0].mxu0 %v462
    %v501 = vpop.f32.mrb[0].mxu0
    %v502 = vadd.f32 0.0, %v501
    %v503 = vpop.f32.mrb[0].mxu0
    %v504 = vpop.f32.mrb[0].mxu0
    %v505 = vpop.f32.mrb[0].mxu0
    %506 = vdwg.mxu0
    %v508 = vsel %vm460, %v431, 0
    %v511 = vsel %vm460, %v443, 0
    %513 = vmatprep.subr.bf16.mxu0 0
    %514 = vmatpush1.bf16.xpose.msra.mxu0 %v511
    %515 = vmatprep.subr.bf16.mxu0 0
    %516 = vmatpush1.bf16.xpose.msra.mxu0 0
    %517 = vmatprep.subr.bf16.mxu0 0
    %518 = vmatpush1.bf16.xpose.msra.mxu0 0
    %519 = vmatprep.subr.bf16.mxu0 0
    %520 = vmatpush1.bf16.xpose.msra.mxu0 0
    %521 = vmatprep.subr.bf16.mxu0 0
    %522 = vmatpush1.bf16.xpose.msra.mxu0 0
    %523 = vmatprep.subr.bf16.mxu0 0
    %524 = vmatpush1.bf16.xpose.msra.mxu0 0
    %525 = vmatprep.subr.bf16.mxu0 0
    %526 = vmatpush1.bf16.xpose.msra.mxu0 0
    %527 = vmatprep.subr.bf16.mxu0 0
    %528 = vmatpush1.bf16.xpose.msra.mxu0 0
    %529 = vmatprep.subr.bf16.mxu0 0
    %530 = vmatpush1.bf16.xpose.msra.mxu0 0
    %531 = vmatprep.subr.bf16.mxu0 0
    %532 = vmatpush1.bf16.xpose.msra.mxu0 0
    %533 = vmatprep.subr.bf16.mxu0 0
    %534 = vmatpush1.bf16.xpose.msra.mxu0 0
    %535 = vmatprep.subr.bf16.mxu0 0
    %536 = vmatpush1.bf16.xpose.msra.mxu0 0
    %537 = vmatprep.subr.bf16.mxu0 0
    %538 = vmatpush1.bf16.xpose.msra.mxu0 0
    %539 = vmatprep.subr.bf16.mxu0 0
    %540 = vmatpush1.bf16.xpose.msra.mxu0 0
    %541 = vmatprep.subr.bf16.mxu0 0
    %542 = vmatpush1.bf16.xpose.msra.mxu0 0
    %543 = vmatprep.subr.bf16.mxu0 0
    %544 = vmatpush1.bf16.xpose.msra.mxu0 0
    %545 = vmatprep.mubr.bf16.mxu0 0
    %546 = vmatmul.mubr.bf16.gmra.mrb[0].mxu0 %v508
    %v547 = vpop.f32.mrb[0].mxu0
    %v548 = vadd.f32 0.0, %v547
    %v549 = vpop.f32.mrb[0].mxu0
    %v550 = vpop.f32.mrb[0].mxu0
    %v551 = vpop.f32.mrb[0].mxu0
    %552 = vdwg.mxu0
    %v554 = vsel %vm460, %v432, 0
    %v557 = vsel %vm460, %v444, 0
    %559 = vmatprep.subr.bf16.mxu0 0
    %560 = vmatpush1.bf16.xpose.msra.mxu0 %v557
    %561 = vmatprep.subr.bf16.mxu0 0
    %562 = vmatpush1.bf16.xpose.msra.mxu0 0
    %563 = vmatprep.subr.bf16.mxu0 0
    %564 = vmatpush1.bf16.xpose.msra.mxu0 0
    %565 = vmatprep.subr.bf16.mxu0 0
    %566 = vmatpush1.bf16.xpose.msra.mxu0 0
    %567 = vmatprep.subr.bf16.mxu0 0
    %568 = vmatpush1.bf16.xpose.msra.mxu0 0
    %569 = vmatprep.subr.bf16.mxu0 0
    %570 = vmatpush1.bf16.xpose.msra.mxu0 0
    %571 = vmatprep.subr.bf16.mxu0 0
    %572 = vmatpush1.bf16.xpose.msra.mxu0 0
    %573 = vmatprep.subr.bf16.mxu0 0
    %574 = vmatpush1.bf16.xpose.msra.mxu0 0
    %575 = vmatprep.subr.bf16.mxu0 0
    %576 = vmatpush1.bf16.xpose.msra.mxu0 0
    %577 = vmatprep.subr.bf16.mxu0 0
    %578 = vmatpush1.bf16.xpose.msra.mxu0 0
    %579 = vmatprep.subr.bf16.mxu0 0
    %580 = vmatpush1.bf16.xpose.msra.mxu0 0
    %581 = vmatprep.subr.bf16.mxu0 0
    %582 = vmatpush1.bf16.xpose.msra.mxu0 0
    %583 = vmatprep.subr.bf16.mxu0 0
    %584 = vmatpush1.bf16.xpose.msra.mxu0 0
    %585 = vmatprep.subr.bf16.mxu0 0
    %586 = vmatpush1.bf16.xpose.msra.mxu0 0
    %587 = vmatprep.subr.bf16.mxu0 0
    %588 = vmatpush1.bf16.xpose.msra.mxu0 0
    %589 = vmatprep.subr.bf16.mxu0 0
    %590 = vmatpush1.bf16.xpose.msra.mxu0 0
    %591 = vmatprep.mubr.bf16.mxu0 0
    %592 = vmatmul.mubr.bf16.gmra.mrb[0].mxu0 %v554
    %v593 = vpop.f32.mrb[0].mxu0
    %v594 = vadd.f32 0.0, %v593
    %v595 = vpop.f32.mrb[0].mxu0
    %v596 = vpop.f32.mrb[0].mxu0
    %v597 = vpop.f32.mrb[0].mxu0
    %598 = vdwg.mxu0
    %v600 = vsel %vm460, %v433, 0
    %v603 = vsel %vm460, %v445, 0
    %605 = vmatprep.subr.bf16.mxu0 0
    %606 = vmatpush1.bf16.xpose.msra.mxu0 %v603
    %607 = vmatprep.subr.bf16.mxu0 0
    %608 = vmatpush1.bf16.xpose.msra.mxu0 0
    %609 = vmatprep.subr.bf16.mxu0 0
    %610 = vmatpush1.bf16.xpose.msra.mxu0 0
    %611 = vmatprep.subr.bf16.mxu0 0
    %612 = vmatpush1.bf16.xpose.msra.mxu0 0
    %613 = vmatprep.subr.bf16.mxu0 0
    %614 = vmatpush1.bf16.xpose.msra.mxu0 0
    %615 = vmatprep.subr.bf16.mxu0 0
    %616 = vmatpush1.bf16.xpose.msra.mxu0 0
    %617 = vmatprep.subr.bf16.mxu0 0
    %618 = vmatpush1.bf16.xpose.msra.mxu0 0
    %619 = vmatprep.subr.bf16.mxu0 0
    %620 = vmatpush1.bf16.xpose.msra.mxu0 0
    %621 = vmatprep.subr.bf16.mxu0 0
    %622 = vmatpush1.bf16.xpose.msra.mxu0 0
    %623 = vmatprep.subr.bf16.mxu0 0
    %624 = vmatpush1.bf16.xpose.msra.mxu0 0
    %625 = vmatprep.subr.bf16.mxu0 0
    %626 = vmatpush1.bf16.xpose.msra.mxu0 0
    %627 = vmatprep.subr.bf16.mxu0 0
    %628 = vmatpush1.bf16.xpose.msra.mxu0 0
    %629 = vmatprep.subr.bf16.mxu0 0
    %630 = vmatpush1.bf16.xpose.msra.mxu0 0
    %631 = vmatprep.subr.bf16.mxu0 0
    %632 = vmatpush1.bf16.xpose.msra.mxu0 0
    %633 = vmatprep.subr.bf16.mxu0 0
    %634 = vmatpush1.bf16.xpose.msra.mxu0 0
    %635 = vmatprep.subr.bf16.mxu0 0
    %636 = vmatpush1.bf16.xpose.msra.mxu0 0
    %637 = vmatprep.mubr.bf16.mxu0 0
    %638 = vmatmul.mubr.bf16.gmra.mrb[0].mxu0 %v600
    %v639 = vpop.f32.mrb[0].mxu0
    %v640 = vadd.f32 0.0, %v639
    %v641 = vpop.f32.mrb[0].mxu0
    %v642 = vpop.f32.mrb[0].mxu0
    %v643 = vpop.f32.mrb[0].mxu0
    %644 = vdwg.mxu0
    %v646 = vsel %vm460, %v434, 0
    %v649 = vsel %vm460, %v446, 0
    %651 = vmatprep.subr.bf16.mxu0 0
    %652 = vmatpush1.bf16.xpose.msra.mxu0 %v649
    %653 = vmatprep.subr.bf16.mxu0 0
    %654 = vmatpush1.bf16.xpose.msra.mxu0 0
    %655 = vmatprep.subr.bf16.mxu0 0
    %656 = vmatpush1.bf16.xpose.msra.mxu0 0
    %657 = vmatprep.subr.bf16.mxu0 0
    %658 = vmatpush1.bf16.xpose.msra.mxu0 0
    %659 = vmatprep.subr.bf16.mxu0 0
    %660 = vmatpush1.bf16.xpose.msra.mxu0 0
    %661 = vmatprep.subr.bf16.mxu0 0
    %662 = vmatpush1.bf16.xpose.msra.mxu0 0
    %663 = vmatprep.subr.bf16.mxu0 0
    %664 = vmatpush1.bf16.xpose.msra.mxu0 0
    %665 = vmatprep.subr.bf16.mxu0 0
    %666 = vmatpush1.bf16.xpose.msra.mxu0 0
    %667 = vmatprep.subr.bf16.mxu0 0
    %668 = vmatpush1.bf16.xpose.msra.mxu0 0
    %669 = vmatprep.subr.bf16.mxu0 0
    %670 = vmatpush1.bf16.xpose.msra.mxu0 0
    %671 = vmatprep.subr.bf16.mxu0 0
    %672 = vmatpush1.bf16.xpose.msra.mxu0 0
    %673 = vmatprep.subr.bf16.mxu0 0
    %674 = vmatpush1.bf16.xpose.msra.mxu0 0
    %675 = vmatprep.subr.bf16.mxu0 0
    %676 = vmatpush1.bf16.xpose.msra.mxu0 0
    %677 = vmatprep.subr.bf16.mxu0 0
    %678 = vmatpush1.bf16.xpose.msra.mxu0 0
    %679 = vmatprep.subr.bf16.mxu0 0
    %680 = vmatpush1.bf16.xpose.msra.mxu0 0
    %681 = vmatprep.subr.bf16.mxu0 0
    %682 = vmatpush1.bf16.xpose.msra.mxu0 0
    %683 = vmatprep.mubr.bf16.mxu0 0
    %684 = vmatmul.mubr.bf16.gmra.mrb[0].mxu0 %v646
    %v685 = vpop.f32.mrb[0].mxu0
    %v686 = vadd.f32 0.0, %v685
    %v687 = vpop.f32.mrb[0].mxu0
    %v688 = vpop.f32.mrb[0].mxu0
    %v689 = vpop.f32.mrb[0].mxu0
    %690 = vdwg.mxu0
    %v692 = vsel %vm460, %v435, 0
    %v695 = vsel %vm460, %v447, 0
    %697 = vmatprep.subr.bf16.mxu0 0
    %698 = vmatpush1.bf16.xpose.msra.mxu0 %v695
    %699 = vmatprep.subr.bf16.mxu0 0
    %700 = vmatpush1.bf16.xpose.msra.mxu0 0
    %701 = vmatprep.subr.bf16.mxu0 0
    %702 = vmatpush1.bf16.xpose.msra.mxu0 0
    %703 = vmatprep.subr.bf16.mxu0 0
    %704 = vmatpush1.bf16.xpose.msra.mxu0 0
    %705 = vmatprep.subr.bf16.mxu0 0
    %706 = vmatpush1.bf16.xpose.msra.mxu0 0
    %707 = vmatprep.subr.bf16.mxu0 0
    %708 = vmatpush1.bf16.xpose.msra.mxu0 0
    %709 = vmatprep.subr.bf16.mxu0 0
    %710 = vmatpush1.bf16.xpose.msra.mxu0 0
    %711 = vmatprep.subr.bf16.mxu0 0
    %712 = vmatpush1.bf16.xpose.msra.mxu0 0
    %713 = vmatprep.subr.bf16.mxu0 0
    %714 = vmatpush1.bf16.xpose.msra.mxu0 0
    %715 = vmatprep.subr.bf16.mxu0 0
    %716 = vmatpush1.bf16.xpose.msra.mxu0 0
    %717 = vmatprep.subr.bf16.mxu0 0
    %718 = vmatpush1.bf16.xpose.msra.mxu0 0
    %719 = vmatprep.subr.bf16.mxu0 0
    %720 = vmatpush1.bf16.xpose.msra.mxu0 0
    %721 = vmatprep.subr.bf16.mxu0 0
    %722 = vmatpush1.bf16.xpose.msra.mxu0 0
    %723 = vmatprep.subr.bf16.mxu0 0
    %724 = vmatpush1.bf16.xpose.msra.mxu0 0
    %725 = vmatprep.subr.bf16.mxu0 0
    %726 = vmatpush1.bf16.xpose.msra.mxu0 0
    %727 = vmatprep.subr.bf16.mxu0 0
    %728 = vmatpush1.bf16.xpose.msra.mxu0 0
    %729 = vmatprep.mubr.bf16.mxu0 0
    %730 = vmatmul.mubr.bf16.gmra.mrb[0].mxu0 %v692
    %v731 = vpop.f32.mrb[0].mxu0
    %v732 = vadd.f32 0.0, %v731
    %v733 = vpop.f32.mrb[0].mxu0
    %v734 = vpop.f32.mrb[0].mxu0
    %v735 = vpop.f32.mrb[0].mxu0
    %736 = vdwg.mxu0
    %vm737 = vcmask 64512
    %v738 = vsel %vm737, %v502, -inf
    %739 = vmax.xlane.f32.xlu0 %v738
    %v740 = vpop.xlane.xlu0 %739
    %v741 = vsel %vm737, %v548, -inf
    %742 = vmax.xlane.f32.xlu0 %v741
    %v743 = vpop.xlane.xlu0 %742
    %v744 = vsel %vm737, %v594, -inf
    %745 = vmax.xlane.f32.xlu0 %v744
    %v746 = vpop.xlane.xlu0 %745
    %v747 = vsel %vm737, %v640, -inf
    %748 = vmax.xlane.f32.xlu0 %v747
    %v749 = vpop.xlane.xlu0 %748
    %v750 = vsel %vm737, %v686, -inf
    %751 = vmax.xlane.f32.xlu0 %v750
    %v752 = vpop.xlane.xlu0 %751
    %v753 = vsel %vm737, %v732, -inf
    %754 = vmax.xlane.f32.xlu0 %v753
    %v755 = vpop.xlane.xlu0 %754
    %v756 = vsub.f32 %v502, %v740
    %v757 = vsub.f32 %v548, %v743
    %v758 = vsub.f32 %v594, %v746
    %v759 = vsub.f32 %v640, %v749
    %v760 = vsub.f32 %v686, %v752
    %v761 = vsub.f32 %v732, %v755
    %v762 = vmul.f32 %v756, 1.442695
    %v763 = vpow.pop %v762
    %v764 = vmul.f32 %v757, 1.442695
    %v765 = vpow.pop %v764
    %v766 = vmul.f32 %v758, 1.442695
    %v767 = vpow.pop %v766
    %v768 = vmul.f32 %v759, 1.442695
    %v769 = vpow.pop %v768
    %v770 = vmul.f32 %v760, 1.442695
    %v771 = vpow.pop %v770
    %v772 = vmul.f32 %v761, 1.442695
    %v773 = vpow.pop %v772
    %v774 = vsel %vm737, %v763, 0.0
    %775 = vadd.xlane.f32.xlu0 %v774
    %v776 = vpop.xlane.xlu0 %775
    %v777 = vsel %vm737, %v765, 0.0
    %778 = vadd.xlane.f32.xlu0 %v777
    %v779 = vpop.xlane.xlu0 %778
    %v780 = vsel %vm737, %v767, 0.0
    %781 = vadd.xlane.f32.xlu0 %v780
    %v782 = vpop.xlane.xlu0 %781
    %v783 = vsel %vm737, %v769, 0.0
    %784 = vadd.xlane.f32.xlu0 %v783
    %v785 = vpop.xlane.xlu0 %784
    %v786 = vsel %vm737, %v771, 0.0
    %787 = vadd.xlane.f32.xlu0 %v786
    %v788 = vpop.xlane.xlu0 %787
    %v789 = vsel %vm737, %v773, 0.0
    %790 = vadd.xlane.f32.xlu0 %v789
    %v791 = vpop.xlane.xlu0 %790
    %v792 = vrcp.pop %v776
    %v793 = vrcp.pop %v779
    %v794 = vrcp.pop %v782
    %v795 = vrcp.pop %v785
    %v796 = vrcp.pop %v788
    %v797 = vrcp.pop %v791
    %v798 = vmul.f32 %v763, %v792
    %v799 = vmul.f32 %v765, %v793
    %v800 = vmul.f32 %v767, %v794
    %v801 = vmul.f32 %v769, %v795
    %v802 = vmul.f32 %v771, %v796
    %v803 = vmul.f32 %v773, %v797
    %v804 = vpack.c.bf16 %v799, %v798
    %v805 = vpack.c.bf16 %v801, %v800
    %v806 = vpack.c.bf16 %v803, %v802
    %v810 = vunpack.c.l.b16 %v804
    %v811 = vunpack.c.h.b16 %v804
    %v812 = vunpack.c.l.b16 %v805
    %v813 = vunpack.c.h.b16 %v805
    %v814 = vunpack.c.l.b16 %v806
    %v815 = vunpack.c.h.b16 %v806
    %v816 = vpack.c.b16 %v810, %v810
    %v817 = vpack.c.b16 %v811, %v811
    %v818 = vpack.c.b16 %v812, %v812
    %v819 = vpack.c.b16 %v813, %v813
    %v820 = vpack.c.b16 %v814, %v814
    %v821 = vpack.c.b16 %v815, %v815
    %vm828 = vcmask 60416
    %829 = vst.msk [vmem:[%s10] sm:$0xf] %vm828, %v816
    %830 = vst.msk [vmem:[%s10 + $0x4] sm:$0xf] %vm828, %v817
    %831 = vst.msk [vmem:[%s10 + $0x8] sm:$0xf] %vm828, %v818
    %832 = vst.msk [vmem:[%s10 + $0xc] sm:$0xf] %vm828, %v819
    %833 = vst.msk [vmem:[%s10 + $0x10] sm:$0xf] %vm828, %v820
    %834 = vst.msk [vmem:[%s10 + $0x14] sm:$0xf] %vm828, %v821
    %v835 = vpack.c.bf16 %v798, %v798
    %v836 = vpack.c.bf16 %v799, %v799
    %v837 = vpack.c.bf16 %v800, %v800
    %v838 = vpack.c.bf16 %v801, %v801
    %v839 = vpack.c.bf16 %v802, %v802
    %v840 = vpack.c.bf16 %v803, %v803
    %v842 = vsel %vm737, %v835, 0
    %vm844 = vcmask 1043456
    %v846 = vsel %vm844, %v454, 0
    %848 = vmatprep.subr.bf16.mxu0 0
    %849 = vmatpush1.bf16.msra.mxu0 %v846
    %850 = vmatprep.subr.bf16.mxu0 0
    %851 = vmatpush1.bf16.msra.mxu0 0
    %852 = vmatprep.subr.bf16.mxu0 0
    %853 = vmatpush1.bf16.msra.mxu0 0
    %854 = vmatprep.subr.bf16.mxu0 0
    %855 = vmatpush1.bf16.msra.mxu0 0
    %856 = vmatprep.subr.bf16.mxu0 0
    %857 = vmatpush1.bf16.msra.mxu0 0
    %858 = vmatprep.subr.bf16.mxu0 0
    %859 = vmatpush1.bf16.msra.mxu0 0
    %860 = vmatprep.subr.bf16.mxu0 0
    %861 = vmatpush1.bf16.msra.mxu0 0
    %862 = vmatprep.subr.bf16.mxu0 0
    %863 = vmatpush1.bf16.msra.mxu0 0
    %864 = vmatprep.subr.bf16.mxu0 0
    %865 = vmatpush1.bf16.msra.mxu0 0
    %866 = vmatprep.subr.bf16.mxu0 0
    %867 = vmatpush1.bf16.msra.mxu0 0
    %868 = vmatprep.subr.bf16.mxu0 0
    %869 = vmatpush1.bf16.msra.mxu0 0
    %870 = vmatprep.subr.bf16.mxu0 0
    %871 = vmatpush1.bf16.msra.mxu0 0
    %872 = vmatprep.subr.bf16.mxu0 0
    %873 = vmatpush1.bf16.msra.mxu0 0
    %874 = vmatprep.subr.bf16.mxu0 0
    %875 = vmatpush1.bf16.msra.mxu0 0
    %876 = vmatprep.subr.bf16.mxu0 0
    %877 = vmatpush1.bf16.msra.mxu0 0
    %878 = vmatprep.subr.bf16.mxu0 0
    %879 = vmatpush1.bf16.msra.mxu0 0
    %880 = vmatprep.mubr.bf16.mxu0 0
    %881 = vmatmul.mubr.bf16.gmra.mrb[0].mxu0 %v842
    %v882 = vpop.f32.mrb[0].mxu0
    %v883 = vadd.f32 0.0, %v882
    %v884 = vpop.f32.mrb[0].mxu0
    %v885 = vpop.f32.mrb[0].mxu0
    %v886 = vpop.f32.mrb[0].mxu0
    %887 = vdwg.mxu0
    %v889 = vsel %vm737, %v836, 0
    %v892 = vsel %vm844, %v455, 0
    %894 = vmatprep.subr.bf16.mxu0 0
    %895 = vmatpush1.bf16.msra.mxu0 %v892
    %896 = vmatprep.subr.bf16.mxu0 0
    %897 = vmatpush1.bf16.msra.mxu0 0
    %898 = vmatprep.subr.bf16.mxu0 0
    %899 = vmatpush1.bf16.msra.mxu0 0
    %900 = vmatprep.subr.bf16.mxu0 0
    %901 = vmatpush1.bf16.msra.mxu0 0
    %902 = vmatprep.subr.bf16.mxu0 0
    %903 = vmatpush1.bf16.msra.mxu0 0
    %904 = vmatprep.subr.bf16.mxu0 0
    %905 = vmatpush1.bf16.msra.mxu0 0
    %906 = vmatprep.subr.bf16.mxu0 0
    %907 = vmatpush1.bf16.msra.mxu0 0
    %908 = vmatprep.subr.bf16.mxu0 0
    %909 = vmatpush1.bf16.msra.mxu0 0
    %910 = vmatprep.subr.bf16.mxu0 0
    %911 = vmatpush1.bf16.msra.mxu0 0
    %912 = vmatprep.subr.bf16.mxu0 0
    %913 = vmatpush1.bf16.msra.mxu0 0
    %914 = vmatprep.subr.bf16.mxu0 0
    %915 = vmatpush1.bf16.msra.mxu0 0
    %916 = vmatprep.subr.bf16.mxu0 0
    %917 = vmatpush1.bf16.msra.mxu0 0
    %918 = vmatprep.subr.bf16.mxu0 0
    %919 = vmatpush1.bf16.msra.mxu0 0
    %920 = vmatprep.subr.bf16.mxu0 0
    %921 = vmatpush1.bf16.msra.mxu0 0
    %922 = vmatprep.subr.bf16.mxu0 0
    %923 = vmatpush1.bf16.msra.mxu0 0
    %924 = vmatprep.subr.bf16.mxu0 0
    %925 = vmatpush1.bf16.msra.mxu0 0
    %926 = vmatprep.mubr.bf16.mxu0 0
    %927 = vmatmul.mubr.bf16.gmra.mrb[0].mxu0 %v889
    %v928 = vpop.f32.mrb[0].mxu0
    %v929 = vadd.f32 0.0, %v928
    %v930 = vpop.f32.mrb[0].mxu0
    %v931 = vpop.f32.mrb[0].mxu0
    %v932 = vpop.f32.mrb[0].mxu0
    %933 = vdwg.mxu0
    %v935 = vsel %vm737, %v837, 0
    %v938 = vsel %vm844, %v456, 0
    %940 = vmatprep.subr.bf16.mxu0 0
    %941 = vmatpush1.bf16.msra.mxu0 %v938
    %942 = vmatprep.subr.bf16.mxu0 0
    %943 = vmatpush1.bf16.msra.mxu0 0
    %944 = vmatprep.subr.bf16.mxu0 0
    %945 = vmatpush1.bf16.msra.mxu0 0
    %946 = vmatprep.subr.bf16.mxu0 0
    %947 = vmatpush1.bf16.msra.mxu0 0
    %948 = vmatprep.subr.bf16.mxu0 0
    %949 = vmatpush1.bf16.msra.mxu0 0
    %950 = vmatprep.subr.bf16.mxu0 0
    %951 = vmatpush1.bf16.msra.mxu0 0
    %952 = vmatprep.subr.bf16.mxu0 0
    %953 = vmatpush1.bf16.msra.mxu0 0
    %954 = vmatprep.subr.bf16.mxu0 0
    %955 = vmatpush1.bf16.msra.mxu0 0
    %956 = vmatprep.subr.bf16.mxu0 0
    %957 = vmatpush1.bf16.msra.mxu0 0
    %958 = vmatprep.subr.bf16.mxu0 0
    %959 = vmatpush1.bf16.msra.mxu0 0
    %960 = vmatprep.subr.bf16.mxu0 0
    %961 = vmatpush1.bf16.msra.mxu0 0
    %962 = vmatprep.subr.bf16.mxu0 0
    %963 = vmatpush1.bf16.msra.mxu0 0
    %964 = vmatprep.subr.bf16.mxu0 0
    %965 = vmatpush1.bf16.msra.mxu0 0
    %966 = vmatprep.subr.bf16.mxu0 0
    %967 = vmatpush1.bf16.msra.mxu0 0
    %968 = vmatprep.subr.bf16.mxu0 0
    %969 = vmatpush1.bf16.msra.mxu0 0
    %970 = vmatprep.subr.bf16.mxu0 0
    %971 = vmatpush1.bf16.msra.mxu0 0
    %972 = vmatprep.mubr.bf16.mxu0 0
    %973 = vmatmul.mubr.bf16.gmra.mrb[0].mxu0 %v935
    %v974 = vpop.f32.mrb[0].mxu0
    %v975 = vadd.f32 0.0, %v974
    %v976 = vpop.f32.mrb[0].mxu0
    %v977 = vpop.f32.mrb[0].mxu0
    %v978 = vpop.f32.mrb[0].mxu0
    %979 = vdwg.mxu0
    %v981 = vsel %vm737, %v838, 0
    %v984 = vsel %vm844, %v457, 0
    %986 = vmatprep.subr.bf16.mxu0 0
    %987 = vmatpush1.bf16.msra.mxu0 %v984
    %988 = vmatprep.subr.bf16.mxu0 0
    %989 = vmatpush1.bf16.msra.mxu0 0
    %990 = vmatprep.subr.bf16.mxu0 0
    %991 = vmatpush1.bf16.msra.mxu0 0
    %992 = vmatprep.subr.bf16.mxu0 0
    %993 = vmatpush1.bf16.msra.mxu0 0
    %994 = vmatprep.subr.bf16.mxu0 0
    %995 = vmatpush1.bf16.msra.mxu0 0
    %996 = vmatprep.subr.bf16.mxu0 0
    %997 = vmatpush1.bf16.msra.mxu0 0
    %998 = vmatprep.subr.bf16.mxu0 0
    %999 = vmatpush1.bf16.msra.mxu0 0
    %1000 = vmatprep.subr.bf16.mxu0 0
    %1001 = vmatpush1.bf16.msra.mxu0 0
    %1002 = vmatprep.subr.bf16.mxu0 0
    %1003 = vmatpush1.bf16.msra.mxu0 0
    %1004 = vmatprep.subr.bf16.mxu0 0
    %1005 = vmatpush1.bf16.msra.mxu0 0
    %1006 = vmatprep.subr.bf16.mxu0 0
    %1007 = vmatpush1.bf16.msra.mxu0 0
    %1008 = vmatprep.subr.bf16.mxu0 0
    %1009 = vmatpush1.bf16.msra.mxu0 0
    %1010 = vmatprep.subr.bf16.mxu0 0
    %1011 = vmatpush1.bf16.msra.mxu0 0
    %1012 = vmatprep.subr.bf16.mxu0 0
    %1013 = vmatpush1.bf16.msra.mxu0 0
    %1014 = vmatprep.subr.bf16.mxu0 0
    %1015 = vmatpush1.bf16.msra.mxu0 0
    %1016 = vmatprep.subr.bf16.mxu0 0
    %1017 = vmatpush1.bf16.msra.mxu0 0
    %1018 = vmatprep.mubr.bf16.mxu0 0
    %1019 = vmatmul.mubr.bf16.gmra.mrb[0].mxu0 %v981
    %v1020 = vpop.f32.mrb[0].mxu0
    %v1021 = vadd.f32 0.0, %v1020
    %v1022 = vpop.f32.mrb[0].mxu0
    %v1023 = vpop.f32.mrb[0].mxu0
    %v1024 = vpop.f32.mrb[0].mxu0
    %1025 = vdwg.mxu0
    %v1027 = vsel %vm737, %v839, 0
    %v1030 = vsel %vm844, %v458, 0
    %1032 = vmatprep.subr.bf16.mxu0 0
    %1033 = vmatpush1.bf16.msra.mxu0 %v1030
    %1034 = vmatprep.subr.bf16.mxu0 0
    %1035 = vmatpush1.bf16.msra.mxu0 0
    %1036 = vmatprep.subr.bf16.mxu0 0
    %1037 = vmatpush1.bf16.msra.mxu0 0
    %1038 = vmatprep.subr.bf16.mxu0 0
    %1039 = vmatpush1.bf16.msra.mxu0 0
    %1040 = vmatprep.subr.bf16.mxu0 0
    %1041 = vmatpush1.bf16.msra.mxu0 0
    %1042 = vmatprep.subr.bf16.mxu0 0
    %1043 = vmatpush1.bf16.msra.mxu0 0
    %1044 = vmatprep.subr.bf16.mxu0 0
    %1045 = vmatpush1.bf16.msra.mxu0 0
    %1046 = vmatprep.subr.bf16.mxu0 0
    %1047 = vmatpush1.bf16.msra.mxu0 0
    %1048 = vmatprep.subr.bf16.mxu0 0
    %1049 = vmatpush1.bf16.msra.mxu0 0
    %1050 = vmatprep.subr.bf16.mxu0 0
    %1051 = vmatpush1.bf16.msra.mxu0 0
    %1052 = vmatprep.subr.bf16.mxu0 0
    %1053 = vmatpush1.bf16.msra.mxu0 0
    %1054 = vmatprep.subr.bf16.mxu0 0
    %1055 = vmatpush1.bf16.msra.mxu0 0
    %1056 = vmatprep.subr.bf16.mxu0 0
    %1057 = vmatpush1.bf16.msra.mxu0 0
    %1058 = vmatprep.subr.bf16.mxu0 0
    %1059 = vmatpush1.bf16.msra.mxu0 0
    %1060 = vmatprep.subr.bf16.mxu0 0
    %1061 = vmatpush1.bf16.msra.mxu0 0
    %1062 = vmatprep.subr.bf16.mxu0 0
    %1063 = vmatpush1.bf16.msra.mxu0 0
    %1064 = vmatprep.mubr.bf16.mxu0 0
    %1065 = vmatmul.mubr.bf16.gmra.mrb[0].mxu0 %v1027
    %v1066 = vpop.f32.mrb[0].mxu0
    %v1067 = vadd.f32 0.0, %v1066
    %v1068 = vpop.f32.mrb[0].mxu0
    %v1069 = vpop.f32.mrb[0].mxu0
    %v1070 = vpop.f32.mrb[0].mxu0
    %1071 = vdwg.mxu0
    %v1073 = vsel %vm737, %v840, 0
    %v1076 = vsel %vm844, %v459, 0
    %1078 = vmatprep.subr.bf16.mxu0 0
    %1079 = vmatpush1.bf16.msra.mxu0 %v1076
    %1080 = vmatprep.subr.bf16.mxu0 0
    %1081 = vmatpush1.bf16.msra.mxu0 0
    %1082 = vmatprep.subr.bf16.mxu0 0
    %1083 = vmatpush1.bf16.msra.mxu0 0
    %1084 = vmatprep.subr.bf16.mxu0 0
    %1085 = vmatpush1.bf16.msra.mxu0 0
    %1086 = vmatprep.subr.bf16.mxu0 0
    %1087 = vmatpush1.bf16.msra.mxu0 0
    %1088 = vmatprep.subr.bf16.mxu0 0
    %1089 = vmatpush1.bf16.msra.mxu0 0
    %1090 = vmatprep.subr.bf16.mxu0 0
    %1091 = vmatpush1.bf16.msra.mxu0 0
    %1092 = vmatprep.subr.bf16.mxu0 0
    %1093 = vmatpush1.bf16.msra.mxu0 0
    %1094 = vmatprep.subr.bf16.mxu0 0
    %1095 = vmatpush1.bf16.msra.mxu0 0
    %1096 = vmatprep.subr.bf16.mxu0 0
    %1097 = vmatpush1.bf16.msra.mxu0 0
    %1098 = vmatprep.subr.bf16.mxu0 0
    %1099 = vmatpush1.bf16.msra.mxu0 0
    %1100 = vmatprep.subr.bf16.mxu0 0
    %1101 = vmatpush1.bf16.msra.mxu0 0
    %1102 = vmatprep.subr.bf16.mxu0 0
    %1103 = vmatpush1.bf16.msra.mxu0 0
    %1104 = vmatprep.subr.bf16.mxu0 0
    %1105 = vmatpush1.bf16.msra.mxu0 0
    %1106 = vmatprep.subr.bf16.mxu0 0
    %1107 = vmatpush1.bf16.msra.mxu0 0
    %1108 = vmatprep.subr.bf16.mxu0 0
    %1109 = vmatpush1.bf16.msra.mxu0 0
    %1110 = vmatprep.mubr.bf16.mxu0 0
    %1111 = vmatmul.mubr.bf16.gmra.mrb[0].mxu0 %v1073
    %v1112 = vpop.f32.mrb[0].mxu0
    %v1113 = vadd.f32 0.0, %v1112
    %v1114 = vpop.f32.mrb[0].mxu0
    %v1115 = vpop.f32.mrb[0].mxu0
    %v1116 = vpop.f32.mrb[0].mxu0
    %1117 = vdwg.mxu0
    %1118 = vst.msk [vmem:[#allocation2] sm:$0xff] %vm460, %v883
    %1119 = vst.msk [vmem:[#allocation2 + $0x8] sm:$0xff] %vm460, %v929
    %1120 = vst.msk [vmem:[#allocation2 + $0x10] sm:$0xff] %vm460, %v975
    %1121 = vst.msk [vmem:[#allocation2 + $0x18] sm:$0xff] %vm460, %v1021
    %1122 = vst.msk [vmem:[#allocation2 + $0x20] sm:$0xff] %vm460, %v1067
    %1123 = vst.msk [vmem:[#allocation2 + $0x28] sm:$0xff] %vm460, %v1113
    %v1124 = vld [vmem:[#allocation2] ss:$3 sm:$0xff]
    %1125 = vst.msk [vmem:[#allocation5] sm:$0xff] %vm460, %v1124
    %v1126 = vld [vmem:[%s350] ss:$3 sm:$0xff]
    %1128 = vrot.lane.b32.xlu0 %v1126, 16
    %v1129 = vpop.permute.xlu0 %1128
    %vm1131 = vcmask 261248
    %1132 = vst.msk [vmem:[#allocation5] sm:$0xff] %vm1131, %v1129
    %v1133 = vld [vmem:[%s367] ss:$3 sm:$0xff]
    %1135 = vrot.lane.b32.xlu0 %v1133, 32
    %v1136 = vpop.permute.xlu0 %1135
    %vm1138 = vcmask 392448
    %1139 = vst.msk [vmem:[#allocation5] sm:$0xff] %vm1138, %v1136
    %v1140 = vld [vmem:[%s379] ss:$3 sm:$0xff]
    %1141 = vst.msk [vmem:[#allocation5 + $0x8] sm:$0xff] %vm460, %v1140
    %v1142 = vld [vmem:[%s389] ss:$3 sm:$0xff]
    %1144 = vrot.lane.b32.xlu0 %v1142, 16
    %v1145 = vpop.permute.xlu0 %1144
    %1147 = vst.msk [vmem:[#allocation5 + $0x8] sm:$0xff] %vm1131, %v1145
    %v1148 = vld [vmem:[%s406] ss:$3 sm:$0xff]
    %1150 = vrot.lane.b32.xlu0 %v1148, 32
    %v1151 = vpop.permute.xlu0 %1150
    %1153 = vst.msk [vmem:[#allocation5 + $0x8] sm:$0xff] %vm1138, %v1151
    %v1154 = vld [vmem:[#allocation5] sm:$0xff]
    %v1155 = vld [vmem:[#allocation5 + $0x8] sm:$0xff]
    %v1156 = vpack.c.bf16 %v1155, %v1154
    %v1157 = vld [vmem:[#allocation14] sm:$0xf]
    %v1158 = vld [vmem:[#allocation14 + $0x4] sm:$0xf]
    %v1159 = vld [vmem:[#allocation14 + $0x8] sm:$0xf]
    %v1160 = vld [vmem:[#allocation14 + $0xc] sm:$0xf]
    %v1161 = vld [vmem:[#allocation14 + $0x10] sm:$0xf]
    %v1162 = vld [vmem:[#allocation14 + $0x14] sm:$0xf]
    %v1163 = vld [vmem:[%s6] sm:$0x1]
    %v1165 = vlaneseq
    %v1166 = vshrl.u32 %v1165, 7
    %v1167 = vsub.s32 0, %v1166
    %v1168 = vrot.slane %v1163, %v1167
    %v1176 = vunpack.c.l.b16 %v1157
    %v1177 = vunpack.c.l.b16 %v1158
    %v1178 = vunpack.c.l.b16 %v1159
    %v1179 = vunpack.c.l.b16 %v1160
    %v1180 = vunpack.c.l.b16 %v1161
    %v1181 = vunpack.c.l.b16 %v1162
    %v1182 = vpack.c.b16 %v1177, %v1176
    %v1183 = vpack.c.b16 %v1179, %v1178
    %v1184 = vpack.c.b16 %v1181, %v1180
    %v1189 = vsel %vm142, %v1156, 0
    %1191 = vmatprep.subr.bf16.mxu0 0
    %1192 = vmatpush1.bf16.msra.mxu0 %v1182
    %1193 = vmatprep.subr.bf16.mxu0 0
    %1194 = vmatpush1.bf16.msra.mxu0 %v1183
    %1195 = vmatprep.subr.bf16.mxu0 0
    %1196 = vmatpush1.bf16.msra.mxu0 %v1184
    %1197 = vmatprep.subr.bf16.mxu0 0
    %1198 = vmatpush1.bf16.msra.mxu0 0
    %1199 = vmatprep.subr.bf16.mxu0 0
    %1200 = vmatpush1.bf16.msra.mxu0 0
    %1201 = vmatprep.subr.bf16.mxu0 0
    %1202 = vmatpush1.bf16.msra.mxu0 0
    %1203 = vmatprep.subr.bf16.mxu0 0
    %1204 = vmatpush1.bf16.msra.mxu0 0
    %1205 = vmatprep.subr.bf16.mxu0 0
    %1206 = vmatpush1.bf16.msra.mxu0 0
    %1207 = vmatprep.subr.bf16.mxu0 0
    %1208 = vmatpush1.bf16.msra.mxu0 0
    %1209 = vmatprep.subr.bf16.mxu0 0
    %1210 = vmatpush1.bf16.msra.mxu0 0
    %1211 = vmatprep.subr.bf16.mxu0 0
    %1212 = vmatpush1.bf16.msra.mxu0 0
    %1213 = vmatprep.subr.bf16.mxu0 0
    %1214 = vmatpush1.bf16.msra.mxu0 0
    %1215 = vmatprep.subr.bf16.mxu0 0
    %1216 = vmatpush1.bf16.msra.mxu0 0
    %1217 = vmatprep.subr.bf16.mxu0 0
    %1218 = vmatpush1.bf16.msra.mxu0 0
    %1219 = vmatprep.subr.bf16.mxu0 0
    %1220 = vmatpush1.bf16.msra.mxu0 0
    %1221 = vmatprep.subr.bf16.mxu0 0
    %1222 = vmatpush1.bf16.msra.mxu0 0
    %1223 = vmatprep.mubr.bf16.mxu0 0
    %1224 = vmatmul.mubr.bf16.gmra.mrb[0].mxu0 %v1189
    %v1225 = vpop.f32.mrb[0].mxu0
    %v1226 = vadd.f32 %v1168, %v1225
    %v1227 = vpop.f32.mrb[0].mxu0
    %v1228 = vpop.f32.mrb[0].mxu0
    %v1229 = vadd.f32 %v1168, %v1228
    %v1230 = vpop.f32.mrb[0].mxu0
    %1231 = vdwg.mxu0
    %v1232 = vadd.f32 %v1226, %v108
    %v1233 = vadd.f32 %v1229, %v109
    %v1234 = vsel %vm142, %v1232, 0.0
    %1235 = vadd.xlane.f32.xlu0 %v1234
    %v1236 = vpop.xlane.xlu0 %1235
    %v1237 = vsel %vm142, %v1233, 0.0
    %1238 = vadd.xlane.f32.xlu0 %v1237
    %v1239 = vpop.xlane.xlu0 %1238
    %v1240 = vrcp.pop 48.0
    %v1241 = vmul.f32 %v1236, %v1240
    %v1242 = vmul.f32 %v1239, %v1240
    %v1243 = vsub.f32 %v1232, %v1241
    %v1244 = vsub.f32 %v1233, %v1242
    %v1245 = vmul.f32 %v1243, %v1243
    %v1246 = vmul.f32 %v1244, %v1244
    %v1247 = vsel %vm142, %v1245, 0.0
    %1248 = vadd.xlane.f32.xlu0 %v1247
    %v1249 = vpop.xlane.xlu0 %1248
    %v1250 = vsel %vm142, %v1246, 0.0
    %1251 = vadd.xlane.f32.xlu0 %v1250
    %v1252 = vpop.xlane.xlu0 %1251
    %v1253 = vmul.f32 %v1249, %v1240
    %v1254 = vmul.f32 %v1252, %v1240
    %v1255 = vadd.f32 %v1253, 1e-05
    %v1256 = vadd.f32 %v1254, 1e-05
    %v1257 = vrsqrt.pop %v1255
    %v1258 = vrsqrt.pop %v1256
    %v1259 = vmul.f32 %v1243, %v1257
    %v1260 = vmul.f32 %v1244, %v1258
    %v1261 = vld [vmem:[%s7] sm:$0x1]
    %v1263 = vlaneseq
    %v1264 = vshrl.u32 %v1263, 7
    %v1265 = vsub.s32 0, %v1264
    %v1266 = vrot.slane %v1261, %v1265
    %v1268 = vmul.f32 %v1259, %v1266
    %v1269 = vmul.f32 %v1260, %v1266
    %v1270 = vld [vmem:[%s8] sm:$0x1]
    %v1272 = vlaneseq
    %v1273 = vshrl.u32 %v1272, 7
    %v1274 = vsub.s32 0, %v1273
    %v1275 = vrot.slane %v1270, %v1274
    %v1277 = vadd.f32 %v1268, %v1275
    %v1278 = vadd.f32 %v1269, %v1275
    %1279 = vst.msk [vmem:[#allocation15] sm:$0xff] %vm142, %v1277
    %1280 = vst.msk [vmem:[#allocation15 + $0x8] sm:$0xff] %vm142, %v1278
    // Predicated region
    $region58: #{tpu_custom_call.1} parent=1 // pred_check
      _
    $region59: #{tpu_custom_call.1} parent=1 // pred_check_branch
      %1282 = sbr.rel (0) target = $region61
    $region60: #{tpu_custom_call.1} parent=1 // pred_region
      %s1284 = ssub.s32 256, 256
      %1285 = vsyncadd [#allocation8], %s1284
      %s1286 = sshll.u32 [#allocation15], 4
      %s1287 = int_to_ptr.vmem [resolvable:$true] %s1286
      %1292 = dma.vmem_to_hbm [thread:$0]  %s1287, 256, %s9, [#allocation8], 128, 128, 8
    $region61: #{tpu_custom_call.1} parent=1 // pred_fallthru
      _
    // Predicated region
    $region62: #{tpu_custom_call.1} parent=1 // pred_check
      _
    $region63: #{tpu_custom_call.1} parent=1 // pred_check_branch
      %1294 = sbr.rel (0) target = $region65
    $region64: #{tpu_custom_call.1} parent=1 // pred_region
      _
    $region65: #{tpu_custom_call.1} parent=1 // pred_fallthru
      _
    // Predicated region
    $region66: #{tpu_custom_call.1} parent=1 // pred_check
      _
    $region67: #{tpu_custom_call.1} parent=1 // pred_check_branch
      %1296 = sbr.rel (0) target = $region69
    $region68: #{tpu_custom_call.1} parent=1 // pred_region
      %1297 = dma.done [#allocation8], 256
    $region69: #{tpu_custom_call.1} parent=1 // pred_fallthru
      _
    // Predicated region
    $region70: #{tpu_custom_call.1} parent=1 // pred_check
      _
    $region71: #{tpu_custom_call.1} parent=1 // pred_check_branch
      %1299 = sbr.rel (0) target = $region73
    $region72: #{tpu_custom_call.1} parent=1 // pred_region
      _
    $region73: #{tpu_custom_call.1} parent=1 // pred_fallthru
      _
    %1300 = vsyncpa [#allocation7], 1
    %1301 = vsyncpa [#allocation10], 1
    %1302 = vsyncpa [#allocation13], 1
    %1303 = vsyncpa [#allocation8], 1

</llo_original>
